<compile_context>
chip_gen: v5e
topology: v5e:2x2
jax: 0.10.0
libtpu: 0.0.40
codegen_flags: <defaults>
</compile_context>

<pallas_src>
import jax
import jax.numpy as jnp
from jax.experimental import pallas as pl
from jax.experimental.pallas import tpu as pltpu

HIDDEN = 1000          # each block emits 1000 features -> cat 2000 -> Linear(2000, 1)
LANE = 128
SUBLANE = 8
HP = 1024              # HIDDEN padded to a lane multiple (unmasked MXU N / lane tiles)


def _round_up(n, m):
    return (n + m - 1) // m * m


def _vmem_limit_bytes():
    """~75% of physical VMEM: overrides v5e/v6e's small default scoped limit
    (=> ~96 MiB there) while leaving compiler headroom on v7x (=> ~48 MiB)."""
    try:
        cap = int(pltpu.get_tpu_info().vmem_capacity_bytes)
        return int(0.75 * cap)
    except Exception:
        return 48 * 1024 * 1024          # safe on every generation


def _pad_feature_dim(d):
    # Lane-aligned when cheap (relative padding small); sublane-aligned otherwise.
    return _round_up(d, LANE) if d >= LANE else _round_up(d, SUBLANE)


def _spec(block_shape, index_map, pm=None):
    if pm is None:
        return pl.BlockSpec(block_shape, index_map)
    return pl.BlockSpec(block_shape, index_map, pipeline_mode=pm)


def _try_single_buffer(run):
    """Invariant (constant index_map) blocks don't need double buffers; try
    pl.Buffered(1) to halve their resident VMEM, fall back if unsupported."""
    if hasattr(pl, "Buffered"):
        try:
            return run(pl.Buffered(1))
        except Exception:
            pass
    return run(None)


def _pick_tb(B, per_row_bytes, resident_bytes, vmem_limit, requested):
    """Batch tile from the VMEM budget left after resident data (bigger tiles
    amortize the ~0.35us/step overhead), with a >=2-tile split for v7x."""
    b8 = _round_up(max(B, 1), SUBLANE)
    if requested is not None:
        return max(SUBLANE, min(_round_up(requested, SUBLANE), b8))
    budget = max(vmem_limit - resident_bytes - (4 << 20), 1 << 20)
    tb = int(budget // max(per_row_bytes, 1))
    tb = max(SUBLANE, min(tb, 1024))
    tb = min(_round_up(tb, SUBLANE), b8)
    # Give v7x's second TensorCore at least one batch tile of its own.
    if b8 // tb < 2 and b8 >= 2 * SUBLANE:
        tb = _round_up(b8 // 2, SUBLANE)
    return tb


# ----------------------------------------------------------------------------
# Kernels
# ----------------------------------------------------------------------------
def _fin_kernel(x1_ref, w1_ref, x2_ref, w2_ref, wf1_ref, wf2_ref, bias_ref,
                out_ref):
    """Resident-weight path: block matmuls on MXU, fused single-lane-reduce head."""
    y = (jnp.dot(x1_ref[...], w1_ref[...], preferred_element_type=jnp.float32)
         * wf1_ref[...]
         + jnp.dot(x2_ref[...], w2_ref[...], preferred_element_type=jnp.float32)
         * wf2_ref[...])
    s = jnp.sum(y, axis=-1) + bias_ref[0, 0]        # one XLU lane reduce
    out_ref[...] = s.reshape(1, 1, -1)              # lane-dense (1, 1, tb) store


def _fin_kstream_kernel(x1_ref, w1_ref, x2_ref, w2_ref, wf1_ref, wf2_ref,
                        bias_ref, out_ref, acc_ref):
    """K-streamed path: weights in (tk, HP) slabs, f32 VMEM accumulator.
    Valid because the wf scaling along HIDDEN commutes with the K sum."""
    k = pl.program_id(1)

    @pl.when(k == 0)
    def _():
        acc_ref[...] = jnp.zeros_like(acc_ref)

    acc_ref[...] += (
        jnp.dot(x1_ref[...], w1_ref[...], preferred_element_type=jnp.float32)
        * wf1_ref[...]
        + jnp.dot(x2_ref[...], w2_ref[...], preferred_element_type=jnp.float32)
        * wf2_ref[...])

    @pl.when(k == pl.num_programs(1) - 1)
    def _():
        s = jnp.sum(acc_ref[...], axis=-1) + bias_ref[0, 0]
        out_ref[...] = s.reshape(1, 1, -1)


def _fin_folded_kernel(x1_ref, v1_ref, x2_ref, v2_ref, bias_ref, out_ref):
    """Head algebraically folded through the (linear) blocks:
    out = x1 @ (w1 @ wf1) + x2 @ (w2 @ wf2) + c  (two GEMVs + scalar)."""
    s = (jnp.sum(x1_ref[...].astype(jnp.float32) * v1_ref[...], axis=-1)
         + jnp.sum(x2_ref[...].astype(jnp.float32) * v2_ref[...], axis=-1)
         + bias_ref[0, 0])
    out_ref[...] = s.reshape(1, 1, -1)


# ----------------------------------------------------------------------------
# Wrapper
# ----------------------------------------------------------------------------
def fin_model_forward(x1, x2, params, *, fold_head=False, use_bf16=False,
                      tb=None, tk=512, k_stream=None):
    """Fused Fin_model forward pass as a single batch-gridded pallas_call."""
    w1, b1, w2, b2, wf, bf = (params[k] for k in
                              ("w1", "b1", "w2", "b2", "wf", "bf"))
    B, D1 = x1.shape
    _, D2 = x2.shape
    hp = HP

    vmem_limit = _vmem_limit_bytes()
    # bf16 halves activation/weight DMA bytes; the MXU is bf16-native on
    # v5e/v6e/v7x alike.  Head math & accumulation stay f32 (accuracy ~1e-2).
    act_dtype = jnp.bfloat16 if use_bf16 else jnp.float32
    act_bytes = jnp.dtype(act_dtype).itemsize

    wf1 = wf[:HIDDEN, :]                    # (1000, 1) — multiplies y1
    wf2 = wf[HIDDEN:, :]                    # (1000, 1) — multiplies y2
    # All bias terms collapse through the 2000->1 head into ONE scalar (SMEM).
    bias_const = (b1 @ wf1 + b2 @ wf2 + bf).reshape(1, 1).astype(jnp.float32)

    def finalize(out_tiles):
        return out_tiles.reshape(-1)[:B].reshape(B, 1)

    # ---------------- fold_head fast path (valid only for linear blocks) -----
    if fold_head:
        D1p = _pad_feature_dim(D1)
        D2p = _pad_feature_dim(D2)
        v1 = jnp.pad((w1 @ wf1).reshape(1, D1),
                     ((0, 0), (0, D1p - D1))).astype(jnp.float32)
        v2 = jnp.pad((w2 @ wf2).reshape(1, D2),
                     ((0, 0), (0, D2p - D2))).astype(jnp.float32)

        per_row = (D1p + D2p) * act_bytes * 2            # double-buffered x tiles
        resident = (D1p + D2p) * 4 * 2
        tb_ = _pick_tb(B, per_row, resident, vmem_limit, tb)
        b_pad = _round_up(B, tb_)
        nb = b_pad // tb_

        x1p = jnp.pad(x1, ((0, b_pad - B), (0, D1p - D1))).astype(act_dtype)
        x2p = jnp.pad(x2, ((0, b_pad - B), (0, D2p - D2))).astype(act_dtype)

        cost = pl.CostEstimate(
            flops=2 * b_pad * (D1p + D2p),
            transcendentals=0,
            bytes_accessed=int(x1p.size + x2p.size) * act_bytes
            + (D1p + D2p) * 4 + 4 + b_pad * 4)

        def run(pm):
            out = pl.pallas_call(
                _fin_folded_kernel,
                out_shape=jax.ShapeDtypeStruct((nb, 1, tb_), jnp.float32),
                grid=(nb,),
                in_specs=[
                    _spec((tb_, D1p), lambda i: (i, 0)),
                    _spec((1, D1p), lambda i: (0, 0), pm),
                    _spec((tb_, D2p), lambda i: (i, 0)),
                    _spec((1, D2p), lambda i: (0, 0), pm),
                    pl.BlockSpec((1, 1), lambda i: (0, 0),
                                 memory_space=pltpu.MemorySpace.SMEM),
                ],
                out_specs=pl.BlockSpec((1, 1, tb_), lambda i: (i, 0, 0)),
                compiler_params=pltpu.CompilerParams(
                    dimension_semantics=("parallel",),
                    vmem_limit_bytes=vmem_limit),
                cost_estimate=cost,
            )(x1p, v1, x2p, v2, bias_const)
            return jax.block_until_ready(out)

        return finalize(_try_single_buffer(run))

    # ---------------- structured path (explicit (B, 1000) block features) ----
    D1p = _pad_feature_dim(D1)
    D2p = _pad_feature_dim(D2)
    resident_w = (D1p + D2p) * hp * act_bytes            # one copy of both weights
    if k_stream is None:
        # Stream K slabs only when (worst-case double-buffered) resident
        # weights would crowd out activation tiles / compiler scratch.
        k_stream = (2 * resident_w) > int(0.6 * vmem_limit)

    wf1r = jnp.pad(wf1.reshape(1, HIDDEN),
                   ((0, 0), (0, hp - HIDDEN))).astype(jnp.float32)
    wf2r = jnp.pad(wf2.reshape(1, HIDDEN),
                   ((0, 0), (0, hp - HIDDEN))).astype(jnp.float32)

    if k_stream:
        tk = max(LANE, _round_up(tk, LANE))
        nk = max(pl.cdiv(D1p, tk), pl.cdiv(D2p, tk), 1)
        tk1 = _round_up(pl.cdiv(D1p, nk), LANE)
        tk2 = _round_up(pl.cdiv(D2p, nk), LANE)
        D1p, D2p = tk1 * nk, tk2 * nk

        w1p = jnp.pad(w1, ((0, D1p - D1), (0, hp - HIDDEN))).astype(act_dtype)
        w2p = jnp.pad(w2, ((0, D2p - D2), (0, hp - HIDDEN))).astype(act_dtype)

        per_row = (tk1 + tk2) * act_bytes * 2 + 3 * hp * 4   # x slabs + acc/partials
        resident = 2 * (tk1 + tk2) * hp * act_bytes + 2 * hp * 4
        tb_ = _pick_tb(B, per_row, resident, vmem_limit, tb)
        b_pad = _round_up(B, tb_)
        nb = b_pad // tb_

        x1p = jnp.pad(x1, ((0, b_pad - B), (0, D1p - D1))).astype(act_dtype)
        x2p = jnp.pad(x2, ((0, b_pad - B), (0, D2p - D2))).astype(act_dtype)

        cost = pl.CostEstimate(
            flops=2 * b_pad * (D1p + D2p) * hp + 4 * b_pad * hp,
            transcendentals=0,
            bytes_accessed=int(x1p.size + x2p.size) * act_bytes
            + nb * int(w1p.size + w2p.size) * act_bytes
            + 2 * hp * 4 + 4 + b_pad * 4)

        def run(pm):
            out = pl.pallas_call(
                _fin_kstream_kernel,
                out_shape=jax.ShapeDtypeStruct((nb, 1, tb_), jnp.float32),
                grid=(nb, nk),
                in_specs=[
                    _spec((tb_, tk1), lambda i, k: (i, k)),
                    _spec((tk1, hp), lambda i, k: (k, 0)),
                    _spec((tb_, tk2), lambda i, k: (i, k)),
                    _spec((tk2, hp), lambda i, k: (k, 0)),
                    _spec((1, hp), lambda i, k: (0, 0), pm),
                    _spec((1, hp), lambda i, k: (0, 0), pm),
                    pl.BlockSpec((1, 1), lambda i, k: (0, 0),
                                 memory_space=pltpu.MemorySpace.SMEM),
                ],
                out_specs=pl.BlockSpec((1, 1, tb_), lambda i, k: (i, 0, 0)),
                scratch_shapes=[pltpu.VMEM((tb_, hp), jnp.float32)],
                compiler_params=pltpu.CompilerParams(
                    dimension_semantics=("parallel", "arbitrary"),
                    vmem_limit_bytes=vmem_limit),
                cost_estimate=cost,
            )(x1p, w1p, x2p, w2p, wf1r, wf2r, bias_const)
            return jax.block_until_ready(out)

        return finalize(_try_single_buffer(run))

    # Resident-weight variant (weights stay in VMEM, activations stream in B).
    w1p = jnp.pad(w1, ((0, D1p - D1), (0, hp - HIDDEN))).astype(act_dtype)
    w2p = jnp.pad(w2, ((0, D2p - D2), (0, hp - HIDDEN))).astype(act_dtype)

    per_row = (D1p + D2p) * act_bytes * 2 + 3 * hp * 4
    resident = 2 * resident_w + 2 * hp * 4               # conservative (2-buf) budget
    tb_ = _pick_tb(B, per_row, resident, vmem_limit, tb)
    b_pad = _round_up(B, tb_)
    nb = b_pad // tb_

    x1p = jnp.pad(x1, ((0, b_pad - B), (0, D1p - D1))).astype(act_dtype)
    x2p = jnp.pad(x2, ((0, b_pad - B), (0, D2p - D2))).astype(act_dtype)

    cost = pl.CostEstimate(
        flops=2 * b_pad * (D1p + D2p) * hp + 4 * b_pad * hp,
        transcendentals=0,
        bytes_accessed=int(x1p.size + x2p.size) * act_bytes
        + int(w1p.size + w2p.size) * act_bytes
        + 2 * hp * 4 + 4 + b_pad * 4)

    def run(pm):
        out = pl.pallas_call(
            _fin_kernel,
            out_shape=jax.ShapeDtypeStruct((nb, 1, tb_), jnp.float32),
            grid=(nb,),
            in_specs=[
                _spec((tb_, D1p), lambda i: (i, 0)),          # x1 tile
                _spec((D1p, hp), lambda i: (0, 0), pm),       # w1 (resident)
                _spec((tb_, D2p), lambda i: (i, 0)),          # x2 tile
                _spec((D2p, hp), lambda i: (0, 0), pm),       # w2 (resident)
                _spec((1, hp), lambda i: (0, 0), pm),         # wf[:1000] row
                _spec((1, hp), lambda i: (0, 0), pm),         # wf[1000:] row
                pl.BlockSpec((1, 1), lambda i: (0, 0),
                             memory_space=pltpu.MemorySpace.SMEM),
            ],
            out_specs=pl.BlockSpec((1, 1, tb_), lambda i: (i, 0, 0)),
            compiler_params=pltpu.CompilerParams(
                dimension_semantics=("parallel",),
                vmem_limit_bytes=vmem_limit),
            cost_estimate=cost,
        )(x1p, w1p, x2p, w2p, wf1r, wf2r, bias_const)
        return jax.block_until_ready(out)

    return finalize(_try_single_buffer(run))


# ----------------------------------------------------------------------------
# Params / reference
# ----------------------------------------------------------------------------
def init_params(key, d1, d2):
    """Deterministic, PyTorch-Linear-style (uniform +/- 1/sqrt(fan_in)) init."""
    ks = jax.random.split(key, 6)

    def lin(kw, kb, fan_in, fan_out):
        bound = 1.0 / jnp.sqrt(fan_in)
        w = jax.random.uniform(kw, (fan_in, fan_out), jnp.float32, -bound, bound)
        b = jax.random.uniform(kb, (1, fan_out), jnp.float32, -bound, bound)
        return w, b

    w1, b1 = lin(ks[0], ks[1], d1, HIDDEN)        # block1: Linear(d1, 1000)
    w2, b2 = lin(ks[2], ks[3], d2, HIDDEN)        # block2: Linear(d2, 1000)
    wf, bf = lin(ks[4], ks[5], 2 * HIDDEN, 1)     # head:   Linear(2000, 1)
    return {"w1": w1, "b1": b1, "w2": w2, "b2": b2, "wf": wf, "bf": bf}


def fin_model_reference(x1, x2, params):
    """Plain-JAX reference matching the PyTorch forward exactly."""
    y1 = x1 @ params["w1"] + params["b1"]
    y2 = x2 @ params["w2"] + params["b2"]
    y = jnp.concatenate([y1, y2], axis=1)         # torch.cat([y1, y2], 1)
    return y @ params["wf"] + params["bf"]        # Linear(2000, 1)


if __name__ == "__main__":
    key = jax.random.PRNGKey(0)
    k_p, k_x1, k_x2, k_pb, k_y1, k_y2 = jax.random.split(key, 6)

    B, D1, D2 = 16, 32, 32
    params = init_params(k_p, D1, D2)
    x1 = jax.random.normal(k_x1, (B, D1), jnp.float32)
    x2 = jax.random.normal(k_x2, (B, D2), jnp.float32)
    ref = fin_model_reference(x1, x2, params)

    # 1) structured f32 path (resident weights, fused VPU/XLU head).
    out = jax.block_until_ready(fin_model_forward(x1, x2, params))
    assert out.shape == (B, 1), out.shape
    assert jnp.allclose(out, ref, atol=1e-4, rtol=1e-4)

    # 2) head-folded fast path (exact for linear blocks; ~1000x fewer FLOPs).
    out_fold = jax.block_until_ready(fin_model_forward(x1, x2, params, fold_head=True))
    assert jnp.allclose(out_fold, ref, atol=1e-3, rtol=1e-3)

    # 3) bf16 streaming (MXU is bf16-native on v5e/v6e/v7x; halves DMA bytes).
    out_bf16 = jax.block_until_ready(fin_model_forward(x1, x2, params, use_bf16=True))
    assert jnp.allclose(out_bf16, ref, atol=5e-2, rtol=5e-2)

    # 4) K-streamed structured path (the large-D / v7x configuration: weights
    #    streamed in (tk, 1024) slabs with an f32 accumulator), forced here at
    #    small shapes so the accumulator path is exercised (nk = 2).
    Db = 256
    params_b = init_params(k_pb, Db, Db)
    x1b = jax.random.normal(k_y1, (B, Db), jnp.float32)
    x2b = jax.random.normal(k_y2, (B, Db), jnp.float32)
    ref_b = fin_model_reference(x1b, x2b, params_b)
    out_ks = jax.block_until_ready(
        fin_model_forward(x1b, x2b, params_b, k_stream=True, tk=128))
    assert jnp.allclose(out_ks, ref_b, atol=1e-3, rtol=1e-3)

    print("KERNEL_OK")
</pallas_src>

<mosaic_0001>
module attributes {stable_mosaic.version = 11 : i64} {
  func.func @_fin_kernel(%arg0: i32, %arg1: memref<8x32xf32, #tpu.memory_space<vmem>>, %arg2: memref<32x1024xf32, #tpu.memory_space<vmem>>, %arg3: memref<8x32xf32, #tpu.memory_space<vmem>>, %arg4: memref<32x1024xf32, #tpu.memory_space<vmem>>, %arg5: memref<1x1024xf32, #tpu.memory_space<vmem>>, %arg6: memref<1x1024xf32, #tpu.memory_space<vmem>>, %arg7: memref<1x1xf32, #tpu.memory_space<smem>>, %arg8: memref<1x1x8xf32, #tpu.memory_space<vmem>>) attributes {dimension_semantics = [#tpu.dimension_semantics<parallel>], iteration_bounds = array<i64: 2>, scalar_prefetch = 0 : i64, scratch_operands = 0 : i64, tpu.core_type = #tpu.core_type<tc>, window_params = [{transform_indices = @transform_0, window_bounds = array<i64: 8, 32>}, {pipeline_mode = #tpu.pipeline_mode<synchronous>, transform_indices = @transform_1, window_bounds = array<i64: 32, 1024>}, {transform_indices = @transform_2, window_bounds = array<i64: 8, 32>}, {pipeline_mode = #tpu.pipeline_mode<synchronous>, transform_indices = @transform_3, window_bounds = array<i64: 32, 1024>}, {pipeline_mode = #tpu.pipeline_mode<synchronous>, transform_indices = @transform_4, window_bounds = array<i64: 1, 1024>}, {pipeline_mode = #tpu.pipeline_mode<synchronous>, transform_indices = @transform_5, window_bounds = array<i64: 1, 1024>}, {transform_indices = @transform_6, window_bounds = array<i64: 1, 1>}, {transform_indices = @transform_7, window_bounds = array<i64: 1, 1, 8>}]} {
    %c0 = arith.constant 0 : index
    %c0_0 = arith.constant 0 : index
    %0 = vector.load %arg1[%c0, %c0_0] : memref<8x32xf32, #tpu.memory_space<vmem>>, vector<8x32xf32>
    %c0_1 = arith.constant 0 : index
    %c0_2 = arith.constant 0 : index
    %1 = vector.load %arg2[%c0_1, %c0_2] : memref<32x1024xf32, #tpu.memory_space<vmem>>, vector<32x1024xf32>
    %cst = arith.constant dense<0.000000e+00> : vector<8x1024xf32>
    %2 = tpu.matmul %0, %1, %cst {dimension_numbers = #tpu.dot_dimension_numbers<[1], [0], [0], [1], [0, 0, 1, 1], [], []>} : vector<8x32xf32>, vector<32x1024xf32>, vector<8x1024xf32> -> vector<8x1024xf32>
    %c0_3 = arith.constant 0 : index
    %c0_4 = arith.constant 0 : index
    %3 = vector.load %arg5[%c0_3, %c0_4] : memref<1x1024xf32, #tpu.memory_space<vmem>>, vector<1x1024xf32>
    %4 = vector.broadcast %3 : vector<1x1024xf32> to vector<8x1024xf32>
    %5 = arith.mulf %2, %4 : vector<8x1024xf32>
    %c0_5 = arith.constant 0 : index
    %c0_6 = arith.constant 0 : index
    %6 = vector.load %arg3[%c0_5, %c0_6] : memref<8x32xf32, #tpu.memory_space<vmem>>, vector<8x32xf32>
    %c0_7 = arith.constant 0 : index
    %c0_8 = arith.constant 0 : index
    %7 = vector.load %arg4[%c0_7, %c0_8] : memref<32x1024xf32, #tpu.memory_space<vmem>>, vector<32x1024xf32>
    %cst_9 = arith.constant dense<0.000000e+00> : vector<8x1024xf32>
    %8 = tpu.matmul %6, %7, %cst_9 {dimension_numbers = #tpu.dot_dimension_numbers<[1], [0], [0], [1], [0, 0, 1, 1], [], []>} : vector<8x32xf32>, vector<32x1024xf32>, vector<8x1024xf32> -> vector<8x1024xf32>
    %c0_10 = arith.constant 0 : index
    %c0_11 = arith.constant 0 : index
    %9 = vector.load %arg6[%c0_10, %c0_11] : memref<1x1024xf32, #tpu.memory_space<vmem>>, vector<1x1024xf32>
    %10 = vector.broadcast %9 : vector<1x1024xf32> to vector<8x1024xf32>
    %11 = arith.mulf %8, %10 : vector<8x1024xf32>
    %12 = arith.addf %5, %11 : vector<8x1024xf32>
    %cst_12 = arith.constant dense<0.000000e+00> : vector<8xf32>
    %13 = vector.multi_reduction <add>, %12, %cst_12 [1] : vector<8x1024xf32> to vector<8xf32>
    %c0_13 = arith.constant 0 : index
    %c0_14 = arith.constant 0 : index
    %14 = memref.load %arg7[%c0_13, %c0_14] : memref<1x1xf32, #tpu.memory_space<smem>>
    %15 = vector.broadcast %14 : f32 to vector<8xf32>
    %16 = arith.addf %13, %15 : vector<8xf32>
    %17 = vector.shape_cast %16 : vector<8xf32> to vector<1x1x8xf32>
    %c0_15 = arith.constant 0 : index
    %c0_16 = arith.constant 0 : index
    %c0_17 = arith.constant 0 : index
    %18 = vector.load %arg8[%c0_15, %c0_16, %c0_17] : memref<1x1x8xf32, #tpu.memory_space<vmem>>, vector<1x1x8xf32>
    tpu.vector_store %arg8[%c0_15, %c0_16, %c0_17], %17 {strides = array<i32>} : memref<1x1x8xf32, #tpu.memory_space<vmem>>, vector<1x1x8xf32>,
    return
  }
  func.func @transform_0(%arg0: i32) -> (i32, i32) {
    %c0_i32 = arith.constant 0 : i32
    %c0_i32_0 = arith.constant 0 : i32
    return %arg0, %c0_i32 : i32, i32
  }
  func.func @transform_1(%arg0: i32) -> (i32, i32) {
    %c0_i32 = arith.constant 0 : i32
    %c0_i32_0 = arith.constant 0 : i32
    %c0_i32_1 = arith.constant 0 : i32
    return %c0_i32, %c0_i32_0 : i32, i32
  }
  func.func @transform_2(%arg0: i32) -> (i32, i32) {
    %c0_i32 = arith.constant 0 : i32
    %c0_i32_0 = arith.constant 0 : i32
    return %arg0, %c0_i32 : i32, i32
  }
  func.func @transform_3(%arg0: i32) -> (i32, i32) {
    %c0_i32 = arith.constant 0 : i32
    %c0_i32_0 = arith.constant 0 : i32
    %c0_i32_1 = arith.constant 0 : i32
    return %c0_i32, %c0_i32_0 : i32, i32
  }
  func.func @transform_4(%arg0: i32) -> (i32, i32) {
    %c0_i32 = arith.constant 0 : i32
    %c0_i32_0 = arith.constant 0 : i32
    %c0_i32_1 = arith.constant 0 : i32
    return %c0_i32, %c0_i32_0 : i32, i32
  }
  func.func @transform_5(%arg0: i32) -> (i32, i32) {
    %c0_i32 = arith.constant 0 : i32
    %c0_i32_0 = arith.constant 0 : i32
    %c0_i32_1 = arith.constant 0 : i32
    return %c0_i32, %c0_i32_0 : i32, i32
  }
  func.func @transform_6(%arg0: i32) -> (i32, i32) {
    %c0_i32 = arith.constant 0 : i32
    %c0_i32_0 = arith.constant 0 : i32
    %c0_i32_1 = arith.constant 0 : i32
    return %c0_i32, %c0_i32_0 : i32, i32
  }
  func.func @transform_7(%arg0: i32) -> (i32, i32, i32) {
    %c0_i32 = arith.constant 0 : i32
    %c0_i32_0 = arith.constant 0 : i32
    %c0_i32_1 = arith.constant 0 : i32
    return %arg0, %c0_i32, %c0_i32_0 : i32, i32, i32
  }
}

module attributes {stable_mosaic.version = 11 : i64} {
  func.func @_fin_kernel(%arg0: i32, %arg1: memref<8x32xf32, #tpu.memory_space<vmem>>, %arg2: memref<32x1024xf32, #tpu.memory_space<vmem>>, %arg3: memref<8x32xf32, #tpu.memory_space<vmem>>, %arg4: memref<32x1024xf32, #tpu.memory_space<vmem>>, %arg5: memref<1x1024xf32, #tpu.memory_space<vmem>>, %arg6: memref<1x1024xf32, #tpu.memory_space<vmem>>, %arg7: memref<1x1xf32, #tpu.memory_space<smem>>, %arg8: memref<1x1x8xf32, #tpu.memory_space<vmem>>) attributes {dimension_semantics = [#tpu.dimension_semantics<parallel>], iteration_bounds = array<i64: 2>, scalar_prefetch = 0 : i64, scratch_operands = 0 : i64, tpu.core_type = #tpu.core_type<tc>, window_params = [{transform_indices = @transform_0, window_bounds = array<i64: 8, 32>}, {pipeline_mode = #tpu.pipeline_mode<synchronous>, transform_indices = @transform_1, window_bounds = array<i64: 32, 1024>}, {transform_indices = @transform_2, window_bounds = array<i64: 8, 32>}, {pipeline_mode = #tpu.pipeline_mode<synchronous>, transform_indices = @transform_3, window_bounds = array<i64: 32, 1024>}, {pipeline_mode = #tpu.pipeline_mode<synchronous>, transform_indices = @transform_4, window_bounds = array<i64: 1, 1024>}, {pipeline_mode = #tpu.pipeline_mode<synchronous>, transform_indices = @transform_5, window_bounds = array<i64: 1, 1024>}, {transform_indices = @transform_6, window_bounds = array<i64: 1, 1>}, {transform_indices = @transform_7, window_bounds = array<i64: 1, 1, 8>}]} {
    %c0 = arith.constant 0 : index
    %c0_0 = arith.constant 0 : index
    %0 = vector.load %arg1[%c0, %c0_0] : memref<8x32xf32, #tpu.memory_space<vmem>>, vector<8x32xf32>
    %c0_1 = arith.constant 0 : index
    %c0_2 = arith.constant 0 : index
    %1 = vector.load %arg2[%c0_1, %c0_2] : memref<32x1024xf32, #tpu.memory_space<vmem>>, vector<32x1024xf32>
    %cst = arith.constant dense<0.000000e+00> : vector<8x1024xf32>
    %2 = tpu.matmul %0, %1, %cst {dimension_numbers = #tpu.dot_dimension_numbers<[1], [0], [0], [1], [0, 0, 1, 1], [], []>} : vector<8x32xf32>, vector<32x1024xf32>, vector<8x1024xf32> -> vector<8x1024xf32>
    %c0_3 = arith.constant 0 : index
    %c0_4 = arith.constant 0 : index
    %3 = vector.load %arg5[%c0_3, %c0_4] : memref<1x1024xf32, #tpu.memory_space<vmem>>, vector<1x1024xf32>
    %4 = vector.broadcast %3 : vector<1x1024xf32> to vector<8x1024xf32>
    %5 = arith.mulf %2, %4 : vector<8x1024xf32>
    %c0_5 = arith.constant 0 : index
    %c0_6 = arith.constant 0 : index
    %6 = vector.load %arg3[%c0_5, %c0_6] : memref<8x32xf32, #tpu.memory_space<vmem>>, vector<8x32xf32>
    %c0_7 = arith.constant 0 : index
    %c0_8 = arith.constant 0 : index
    %7 = vector.load %arg4[%c0_7, %c0_8] : memref<32x1024xf32, #tpu.memory_space<vmem>>, vector<32x1024xf32>
    %cst_9 = arith.constant dense<0.000000e+00> : vector<8x1024xf32>
    %8 = tpu.matmul %6, %7, %cst_9 {dimension_numbers = #tpu.dot_dimension_numbers<[1], [0], [0], [1], [0, 0, 1, 1], [], []>} : vector<8x32xf32>, vector<32x1024xf32>, vector<8x1024xf32> -> vector<8x1024xf32>
    %c0_10 = arith.constant 0 : index
    %c0_11 = arith.constant 0 : index
    %9 = vector.load %arg6[%c0_10, %c0_11] : memref<1x1024xf32, #tpu.memory_space<vmem>>, vector<1x1024xf32>
    %10 = vector.broadcast %9 : vector<1x1024xf32> to vector<8x1024xf32>
    %11 = arith.mulf %8, %10 : vector<8x1024xf32>
    %12 = arith.addf %5, %11 : vector<8x1024xf32>
    %cst_12 = arith.constant dense<0.000000e+00> : vector<8xf32>
    %13 = vector.multi_reduction <add>, %12, %cst_12 [1] : vector<8x1024xf32> to vector<8xf32>
    %c0_13 = arith.constant 0 : index
    %c0_14 = arith.constant 0 : index
    %14 = memref.load %arg7[%c0_13, %c0_14] : memref<1x1xf32, #tpu.memory_space<smem>>
    %15 = vector.broadcast %14 : f32 to vector<8xf32>
    %16 = arith.addf %13, %15 : vector<8xf32>
    %17 = vector.shape_cast %16 : vector<8xf32> to vector<1x1x8xf32>
    %c0_15 = arith.constant 0 : index
    %c0_16 = arith.constant 0 : index
    %c0_17 = arith.constant 0 : index
    %18 = vector.load %arg8[%c0_15, %c0_16, %c0_17] : memref<1x1x8xf32, #tpu.memory_space<vmem>>, vector<1x1x8xf32>
    tpu.vector_store %arg8[%c0_15, %c0_16, %c0_17], %17 {strides = array<i32>} : memref<1x1x8xf32, #tpu.memory_space<vmem>>, vector<1x1x8xf32>,
    return
  }
  func.func @transform_0(%arg0: i32) -> (i32, i32) {
    %c0_i32 = arith.constant 0 : i32
    %c0_i32_0 = arith.constant 0 : i32
    return %arg0, %c0_i32 : i32, i32
  }
  func.func @transform_1(%arg0: i32) -> (i32, i32) {
    %c0_i32 = arith.constant 0 : i32
    %c0_i32_0 = arith.constant 0 : i32
    %c0_i32_1 = arith.constant 0 : i32
    return %c0_i32, %c0_i32_0 : i32, i32
  }
  func.func @transform_2(%arg0: i32) -> (i32, i32) {
    %c0_i32 = arith.constant 0 : i32
    %c0_i32_0 = arith.constant 0 : i32
    return %arg0, %c0_i32 : i32, i32
  }
  func.func @transform_3(%arg0: i32) -> (i32, i32) {
    %c0_i32 = arith.constant 0 : i32
    %c0_i32_0 = arith.constant 0 : i32
    %c0_i32_1 = arith.constant 0 : i32
    return %c0_i32, %c0_i32_0 : i32, i32
  }
  func.func @transform_4(%arg0: i32) -> (i32, i32) {
    %c0_i32 = arith.constant 0 : i32
    %c0_i32_0 = arith.constant 0 : i32
    %c0_i32_1 = arith.constant 0 : i32
    return %c0_i32, %c0_i32_0 : i32, i32
  }
  func.func @transform_5(%arg0: i32) -> (i32, i32) {
    %c0_i32 = arith.constant 0 : i32
    %c0_i32_0 = arith.constant 0 : i32
    %c0_i32_1 = arith.constant 0 : i32
    return %c0_i32, %c0_i32_0 : i32, i32
  }
  func.func @transform_6(%arg0: i32) -> (i32, i32) {
    %c0_i32 = arith.constant 0 : i32
    %c0_i32_0 = arith.constant 0 : i32
    %c0_i32_1 = arith.constant 0 : i32
    return %c0_i32, %c0_i32_0 : i32, i32
  }
  func.func @transform_7(%arg0: i32) -> (i32, i32, i32) {
    %c0_i32 = arith.constant 0 : i32
    %c0_i32_0 = arith.constant 0 : i32
    %c0_i32_1 = arith.constant 0 : i32
    return %arg0, %c0_i32, %c0_i32_0 : i32, i32, i32
  }
}

</mosaic_0001>

<llo_original>
// kernel: tpu_custom_call.1
$region0: #{tpu_custom_call.1}
  #allocation0 [shape = 'u32[]', space=smem, size = 0x4, offset = 0x4, fixed_abs, tag = 'smem constant byte address 0x4 - core index']
  #allocation1 [shape = 'u32[72,128]{1,0:T(1,128)}', space=vmem, size = 0x9000, scoped, tag = 'internal scratch']
  #allocation2 [shape = 'f32[1,1]{1,0:T(1,128)S(6)}', space=smem, size = 0x200, scoped, tag = 'scoped memory for tpu_custom_call.1']
  %s0 = inlined_call_operand.hbm [shape: f32[16,32], index: 0, kind: input, shape index: {}]
  %s1 = inlined_call_operand.hbm [shape: f32[32,1024], index: 1, kind: input, shape index: {}]
  %s2 = inlined_call_operand.hbm [shape: f32[16,32], index: 2, kind: input, shape index: {}]
  %s3 = inlined_call_operand.hbm [shape: f32[32,1024], index: 3, kind: input, shape index: {}]
  %s4 = inlined_call_operand.hbm [shape: f32[1,1024], index: 4, kind: input, shape index: {}]
  %s5 = inlined_call_operand.hbm [shape: f32[1,1024], index: 5, kind: input, shape index: {}]
  %s6 = inlined_call_operand.<no memory space> [shape: f32[1,1], index: 6, kind: input, shape index: {}]
  %s7 = inlined_call_operand.hbm [shape: f32[2,1,8], index: 7, kind: output, shape index: {}]
  %s8 = sld [smem:[#allocation0]]
  $region85: #{tpu_custom_call.1} parent=0
    _
  %s10 = ssub.s32 1, %s8
  %s11 = scalar_select 0, %s10, %s8
  %12 = sst [smem:[#allocation2]] %s6
  $region1: #{tpu_custom_call.1} parent=0
    #allocation3 [shape = 'u8[8192]{0}', space=vmem, size = 0x2000, scoped, tag = 'input window, operand 0']
    #allocation4 [shape = 's32[2]{0}', space=sflag, size = 0x8, scoped, tag = 'scoped memory for tpu_custom_call.1']
    #allocation5 [shape = 's32[2]{0}', space=sflag, size = 0x8, scoped, tag = 'scoped memory for tpu_custom_call.1']
    #allocation6 [shape = 'u8[131072]{0}', space=vmem, size = 0x20000, scoped, tag = 'input window, operand 1, single buffered']
    #allocation7 [shape = 's32[1]{0}', space=sflag, size = 0x4, scoped, tag = 'scoped memory for tpu_custom_call.1']
    #allocation8 [shape = 'u8[8192]{0}', space=vmem, size = 0x2000, scoped, tag = 'input window, operand 2']
    #allocation9 [shape = 'u8[131072]{0}', space=vmem, size = 0x20000, scoped, tag = 'input window, operand 3, single buffered']
    #allocation10 [shape = 'u8[4096]{0}', space=vmem, size = 0x1000, scoped, tag = 'input window, operand 4, single buffered']
    #allocation11 [shape = 's32[1]{0}', space=sflag, size = 0x4, scoped, tag = 'scoped memory for tpu_custom_call.1']
    #allocation12 [shape = 'u8[4096]{0}', space=vmem, size = 0x1000, scoped, tag = 'input window, operand 5, single buffered']
    #allocation13 [shape = 'u8[1024]{0}', space=vmem, size = 0x400, scoped, tag = 'output window, operand 0']
    %13 = vsyncpa [#allocation4], 0
    %s14 = scalar_lea.sflag [#allocation4], 1
    %15 = vsyncpa %s14, 0
    %16 = vsyncpa [#allocation7], 0
    %17 = vsyncpa [#allocation11], 0
    %18 = vsyncpa [#allocation5], 0
    %s19 = scalar_lea.sflag [#allocation5], 1
    %20 = vsyncpa %s19, 0
    loop: start=0, step=1, limit=4
    $region2: #{tpu_custom_call.1} parent=1 // loop_pre_header
      _
    $region3: #{tpu_custom_call.1} parent=1 // loop_header
      %s22 = sphi 0, %s26
      %p23 = scmp.ge.s32.totalorder %s22, 4
      %s32 = sphi 0, %s34
      %s35 = sphi 0, %s32
      %s36 = sphi 0, %s35
      %s52 = sphi 0, %s36
      %s56 = sphi 0, %s56
      %s58 = sphi 0, %s56
      %s59 = sphi 0, %s58
      %s73 = sphi 0, %s59
      %s79 = sphi 0, %s81
      %s82 = sphi 0, %s79
      %s83 = sphi 0, %s82
      %s99 = sphi 0, %s83
      %s103 = sphi 0, %s103
      %s105 = sphi 0, %s103
      %s106 = sphi 0, %s105
      %s120 = sphi 0, %s106
      %s124 = sphi 0, %s124
      %s126 = sphi 0, %s124
      %s127 = sphi 0, %s126
      %s141 = sphi 0, %s127
      %s145 = sphi 0, %s145
      %s147 = sphi 0, %s145
      %s148 = sphi 0, %s147
      %s162 = sphi 0, %s148
      %s166 = sphi 0, %s166
      %s168 = sphi 0, %s166
      %s169 = sphi 0, %s168
      %s183 = sphi 0, %s169
      %s189 = sphi 0, %s191
      %s192 = sphi 0, %s189
      %s193 = sphi 0, %s192
      %s209 = sphi 0, %s193
    $region4: #{tpu_custom_call.1} parent=1 // loop_header_branch
      %25 = sbr.rel (%p23) target = $region8
    $region5: #{tpu_custom_call.1} parent=1 // loop_body
      %s27 = ssub.s32 %s22, 1
      %s28 = ssub.s32 %s22, 2
      %s29 = sadd.s32 %s22, 1
      %s30 = ssub.s32 %s22, %s29
      %p31 = scmp.eq.s32.totalorder %s30, 0
      %s33 = sadd.s32 %s32, 1
      %s34 = scalar_select %p31, %s32, %s33
      %p37 = pneg %p31
      %p38 = scmp.eq.s32.totalorder %s22, 1
      %p39 = por %p37, %p38
      %p40 = scmp.ne.s32.totalorder %s32, %s35
      %p41 = scmp.eq.s32.totalorder %s22, 0
      %p42 = por %p40, %p41
      %p43 = scmp.ne.s32.totalorder %s32, %s35
      %p44 = scmp.eq.s32.totalorder %s27, 1
      %p45 = por %p43, %p44
      %p46 = scmp.ne.s32.totalorder %s35, %s36
      %p47 = scmp.eq.s32.totalorder %s27, 0
      %p48 = por %p46, %p47
      %p49 = scmp.ne.s32.totalorder %s35, %s36
      %p50 = scmp.eq.s32.totalorder %s28, 1
      %p51 = por %p49, %p50
      %p53 = scmp.ne.s32.totalorder %s36, %s52
      %p54 = scmp.eq.s32.totalorder %s28, 0
      %p55 = por %p53, %p54
      %s57 = sadd.s32 %s56, 1
      %p60 = scmp.eq.s32.totalorder %s22, 1
      %p61 = scmp.ne.s32.totalorder %s56, %s58
      %p62 = scmp.eq.s32.totalorder %s22, 0
      %p63 = por %p61, %p62
      %p64 = scmp.ne.s32.totalorder %s56, %s58
      %p65 = scmp.eq.s32.totalorder %s27, 1
      %p66 = por %p64, %p65
      %p67 = scmp.ne.s32.totalorder %s58, %s59
      %p68 = scmp.eq.s32.totalorder %s27, 0
      %p69 = por %p67, %p68
      %p70 = scmp.ne.s32.totalorder %s58, %s59
      %p71 = scmp.eq.s32.totalorder %s28, 1
      %p72 = por %p70, %p71
      %p74 = scmp.ne.s32.totalorder %s59, %s73
      %p75 = scmp.eq.s32.totalorder %s28, 0
      %p76 = por %p74, %p75
      %s77 = ssub.s32 %s22, %s29
      %p78 = scmp.eq.s32.totalorder %s77, 0
      %s80 = sadd.s32 %s79, 1
      %s81 = scalar_select %p78, %s79, %s80
      %p84 = pneg %p78
      %p85 = scmp.eq.s32.totalorder %s22, 1
      %p86 = por %p84, %p85
      %p87 = scmp.ne.s32.totalorder %s79, %s82
      %p88 = scmp.eq.s32.totalorder %s22, 0
      %p89 = por %p87, %p88
      %p90 = scmp.ne.s32.totalorder %s79, %s82
      %p91 = scmp.eq.s32.totalorder %s27, 1
      %p92 = por %p90, %p91
      %p93 = scmp.ne.s32.totalorder %s82, %s83
      %p94 = scmp.eq.s32.totalorder %s27, 0
      %p95 = por %p93, %p94
      %p96 = scmp.ne.s32.totalorder %s82, %s83
      %p97 = scmp.eq.s32.totalorder %s28, 1
      %p98 = por %p96, %p97
      %p100 = scmp.ne.s32.totalorder %s83, %s99
      %p101 = scmp.eq.s32.totalorder %s28, 0
      %p102 = por %p100, %p101
      %s104 = sadd.s32 %s103, 1
      %p107 = scmp.eq.s32.totalorder %s22, 1
      %p108 = scmp.ne.s32.totalorder %s103, %s105
      %p109 = scmp.eq.s32.totalorder %s22, 0
      %p110 = por %p108, %p109
      %p111 = scmp.ne.s32.totalorder %s103, %s105
      %p112 = scmp.eq.s32.totalorder %s27, 1
      %p113 = por %p111, %p112
      %p114 = scmp.ne.s32.totalorder %s105, %s106
      %p115 = scmp.eq.s32.totalorder %s27, 0
      %p116 = por %p114, %p115
      %p117 = scmp.ne.s32.totalorder %s105, %s106
      %p118 = scmp.eq.s32.totalorder %s28, 1
      %p119 = por %p117, %p118
      %p121 = scmp.ne.s32.totalorder %s106, %s120
      %p122 = scmp.eq.s32.totalorder %s28, 0
      %p123 = por %p121, %p122
      %s125 = sadd.s32 %s124, 1
      %p128 = scmp.eq.s32.totalorder %s22, 1
      %p129 = scmp.ne.s32.totalorder %s124, %s126
      %p130 = scmp.eq.s32.totalorder %s22, 0
      %p131 = por %p129, %p130
      %p132 = scmp.ne.s32.totalorder %s124, %s126
      %p133 = scmp.eq.s32.totalorder %s27, 1
      %p134 = por %p132, %p133
      %p135 = scmp.ne.s32.totalorder %s126, %s127
      %p136 = scmp.eq.s32.totalorder %s27, 0
      %p137 = por %p135, %p136
      %p138 = scmp.ne.s32.totalorder %s126, %s127
      %p139 = scmp.eq.s32.totalorder %s28, 1
      %p140 = por %p138, %p139
      %p142 = scmp.ne.s32.totalorder %s127, %s141
      %p143 = scmp.eq.s32.totalorder %s28, 0
      %p144 = por %p142, %p143
      %s146 = sadd.s32 %s145, 1
      %p149 = scmp.eq.s32.totalorder %s22, 1
      %p150 = scmp.ne.s32.totalorder %s145, %s147
      %p151 = scmp.eq.s32.totalorder %s22, 0
      %p152 = por %p150, %p151
      %p153 = scmp.ne.s32.totalorder %s145, %s147
      %p154 = scmp.eq.s32.totalorder %s27, 1
      %p155 = por %p153, %p154
      %p156 = scmp.ne.s32.totalorder %s147, %s148
      %p157 = scmp.eq.s32.totalorder %s27, 0
      %p158 = por %p156, %p157
      %p159 = scmp.ne.s32.totalorder %s147, %s148
      %p160 = scmp.eq.s32.totalorder %s28, 1
      %p161 = por %p159, %p160
      %p163 = scmp.ne.s32.totalorder %s148, %s162
      %p164 = scmp.eq.s32.totalorder %s28, 0
      %p165 = por %p163, %p164
      %s167 = sadd.s32 %s166, 1
      %p170 = scmp.eq.s32.totalorder %s22, 1
      %p171 = scmp.ne.s32.totalorder %s166, %s168
      %p172 = scmp.eq.s32.totalorder %s22, 0
      %p173 = por %p171, %p172
      %p174 = scmp.ne.s32.totalorder %s166, %s168
      %p175 = scmp.eq.s32.totalorder %s27, 1
      %p176 = por %p174, %p175
      %p177 = scmp.ne.s32.totalorder %s168, %s169
      %p178 = scmp.eq.s32.totalorder %s27, 0
      %p179 = por %p177, %p178
      %p180 = scmp.ne.s32.totalorder %s168, %s169
      %p181 = scmp.eq.s32.totalorder %s28, 1
      %p182 = por %p180, %p181
      %p184 = scmp.ne.s32.totalorder %s169, %s183
      %p185 = scmp.eq.s32.totalorder %s28, 0
      %p186 = por %p184, %p185
      %s187 = ssub.s32 %s22, %s29
      %p188 = scmp.eq.s32.totalorder %s187, 0
      %s190 = sadd.s32 %s189, 1
      %s191 = scalar_select %p188, %s189, %s190
      %p194 = pneg %p188
      %p195 = scmp.eq.s32.totalorder %s22, 1
      %p196 = por %p194, %p195
      %p197 = scmp.ne.s32.totalorder %s189, %s192
      %p198 = scmp.eq.s32.totalorder %s22, 0
      %p199 = por %p197, %p198
      %p200 = scmp.ne.s32.totalorder %s189, %s192
      %p201 = scmp.eq.s32.totalorder %s27, 1
      %p202 = por %p200, %p201
      %p203 = scmp.ne.s32.totalorder %s192, %s193
      %p204 = scmp.eq.s32.totalorder %s27, 0
      %p205 = por %p203, %p204
      %p206 = scmp.ne.s32.totalorder %s192, %s193
      %p207 = scmp.eq.s32.totalorder %s28, 1
      %p208 = por %p206, %p207
      %p210 = scmp.ne.s32.totalorder %s193, %s209
      %p211 = scmp.eq.s32.totalorder %s28, 0
      %p212 = por %p210, %p211
      %p213 = scmp.le.s32.totalorder 1, %s22
      %p214 = scmp.lt.s32.totalorder %s22, 3
      %p215 = pnand %p213, %p214
      %p216 = pneg %p215
      // Predicated region
      $region9: #{tpu_custom_call.1} parent=5 // pred_check
        _
      $region10: #{tpu_custom_call.1} parent=5 // pred_check_branch
        %218 = sbr.rel (%p215) target = $region12
      $region11: #{tpu_custom_call.1} parent=5 // pred_region
        %s219 = ssub.s32 %s22, 1
        // Predicated region
        $region13: #{tpu_custom_call.1} parent=11 // pred_check
          %p220 = pneg %p69
        $region14: #{tpu_custom_call.1} parent=11 // pred_check_branch
          %222 = sbr.rel (%p220) target = $region16
        $region15: #{tpu_custom_call.1} parent=11 // pred_region
          %224 = vsyncadd [#allocation7], 0
          %s225 = sshll.u32 %s1, 4
          %s226 = int_to_ptr.hbm [resolvable:$true] %s225
          %s227 = sshll.u32 [#allocation6], 4
          %s228 = int_to_ptr.vmem [resolvable:$true] %s227
          %233 = dma.hbm_to_vmem [thread:$0]  %s226, 4096, %s228, [#allocation7], 1024, 1024, 64
        $region16: #{tpu_custom_call.1} parent=11 // pred_fallthru
          _
        // Predicated region
        $region17: #{tpu_custom_call.1} parent=11 // pred_check
          %p234 = pneg %p116
        $region18: #{tpu_custom_call.1} parent=11 // pred_check_branch
          %236 = sbr.rel (%p234) target = $region20
        $region19: #{tpu_custom_call.1} parent=11 // pred_region
          %238 = vsyncadd [#allocation7], 0
          %s239 = sshll.u32 %s3, 4
          %s240 = int_to_ptr.hbm [resolvable:$true] %s239
          %s241 = sshll.u32 [#allocation9], 4
          %s242 = int_to_ptr.vmem [resolvable:$true] %s241
          %247 = dma.hbm_to_vmem [thread:$0]  %s240, 4096, %s242, [#allocation7], 1024, 1024, 64
        $region20: #{tpu_custom_call.1} parent=11 // pred_fallthru
          _
        // Predicated region
        $region21: #{tpu_custom_call.1} parent=11 // pred_check
          %p248 = pneg %p137
        $region22: #{tpu_custom_call.1} parent=11 // pred_check_branch
          %250 = sbr.rel (%p248) target = $region24
        $region23: #{tpu_custom_call.1} parent=11 // pred_region
          %252 = vsyncadd [#allocation11], 0
          %s254 = sshll.u32 %s4, 4
          %s255 = int_to_ptr.hbm [resolvable:$true] %s254
          %s256 = sshll.u32 [#allocation10], 4
          %s257 = int_to_ptr.vmem [resolvable:$true] %s256
          %259 = dma.hbm_to_vmem [thread:$0]  %s255, 128, %s257, [#allocation11]
        $region24: #{tpu_custom_call.1} parent=11 // pred_fallthru
          _
        // Predicated region
        $region25: #{tpu_custom_call.1} parent=11 // pred_check
          %p260 = pneg %p158
        $region26: #{tpu_custom_call.1} parent=11 // pred_check_branch
          %262 = sbr.rel (%p260) target = $region28
        $region27: #{tpu_custom_call.1} parent=11 // pred_region
          %264 = vsyncadd [#allocation11], 0
          %s266 = sshll.u32 %s5, 4
          %s267 = int_to_ptr.hbm [resolvable:$true] %s266
          %s268 = sshll.u32 [#allocation12], 4
          %s269 = int_to_ptr.vmem [resolvable:$true] %s268
          %271 = dma.hbm_to_vmem [thread:$0]  %s267, 128, %s269, [#allocation11]
        $region28: #{tpu_custom_call.1} parent=11 // pred_fallthru
          _
        // Predicated region
        $region29: #{tpu_custom_call.1} parent=11 // pred_check
          %p272 = pneg %p179
        $region30: #{tpu_custom_call.1} parent=11 // pred_check_branch
          %274 = sbr.rel (%p272) target = $region32
        $region31: #{tpu_custom_call.1} parent=11 // pred_region
          _
        $region32: #{tpu_custom_call.1} parent=11 // pred_fallthru
          _
      $region12: #{tpu_custom_call.1} parent=5 // pred_fallthru
        _
      %p275 = scmp.lt.s32.totalorder %s22, 2
      // Predicated region
      $region33: #{tpu_custom_call.1} parent=5 // pred_check
        %p276 = pneg %p275
      $region34: #{tpu_custom_call.1} parent=5 // pred_check_branch
        %278 = sbr.rel (%p276) target = $region36
      $region35: #{tpu_custom_call.1} parent=5 // pred_region
        // Predicated region
        $region37: #{tpu_custom_call.1} parent=35 // pred_check
          %p279 = pneg %p42
        $region38: #{tpu_custom_call.1} parent=35 // pred_check_branch
          %281 = sbr.rel (%p279) target = $region40
        $region39: #{tpu_custom_call.1} parent=35 // pred_region
          %s282 = sand.u32 %s22, 1
          %s283 = scalar_lea.sflag [#allocation4], %s282
          %s284 = sand.u32 %s32, 1
          %s285 = smul.addr %s284, 8
          %s286 = scalar_lea.vmem [#allocation3], %s285
          %288 = vsyncadd %s283, 0
          %s289 = smul.addr %s22, 8
          %s290 = scalar_lea.hbm %s0, %s289
          %s292 = sshll.u32 %s290, 4
          %s293 = int_to_ptr.hbm [resolvable:$true] %s292
          %s294 = sshll.u32 %s286, 4
          %s295 = int_to_ptr.vmem [resolvable:$true] %s294
          %297 = dma.hbm_to_vmem [thread:$0]  %s293, 128, %s295, %s283
        $region40: #{tpu_custom_call.1} parent=35 // pred_fallthru
          _
        // Predicated region
        $region41: #{tpu_custom_call.1} parent=35 // pred_check
          %p298 = pneg %p89
        $region42: #{tpu_custom_call.1} parent=35 // pred_check_branch
          %300 = sbr.rel (%p298) target = $region44
        $region43: #{tpu_custom_call.1} parent=35 // pred_region
          %s301 = sand.u32 %s22, 1
          %s302 = scalar_lea.sflag [#allocation4], %s301
          %s303 = sand.u32 %s79, 1
          %s304 = smul.addr %s303, 8
          %s305 = scalar_lea.vmem [#allocation8], %s304
          %307 = vsyncadd %s302, 0
          %s308 = smul.addr %s22, 8
          %s309 = scalar_lea.hbm %s2, %s308
          %s311 = sshll.u32 %s309, 4
          %s312 = int_to_ptr.hbm [resolvable:$true] %s311
          %s313 = sshll.u32 %s305, 4
          %s314 = int_to_ptr.vmem [resolvable:$true] %s313
          %316 = dma.hbm_to_vmem [thread:$0]  %s312, 128, %s314, %s302
        $region44: #{tpu_custom_call.1} parent=35 // pred_fallthru
          _
      $region36: #{tpu_custom_call.1} parent=5 // pred_fallthru
        _
      %p317 = scmp.le.s32.totalorder 1, %s22
      %p318 = scmp.lt.s32.totalorder %s22, 3
      %p319 = pnand %p317, %p318
      %p320 = pneg %p319
      // Predicated region
      $region45: #{tpu_custom_call.1} parent=5 // pred_check
        _
      $region46: #{tpu_custom_call.1} parent=5 // pred_check_branch
        %322 = sbr.rel (%p319) target = $region48
      $region47: #{tpu_custom_call.1} parent=5 // pred_region
        %s323 = ssub.s32 %s22, 1
        %s324 = sand.u32 %s27, 1
        %s325 = scalar_lea.sflag [#allocation4], %s324
        %s326 = sand.u32 %s35, 1
        %s327 = smul.addr %s326, 8
        %s328 = scalar_lea.vmem [#allocation3], %s327
        // Predicated region
        $region49: #{tpu_custom_call.1} parent=47 // pred_check
          %p329 = pneg %p48
        $region50: #{tpu_custom_call.1} parent=47 // pred_check_branch
          %331 = sbr.rel (%p329) target = $region52
        $region51: #{tpu_custom_call.1} parent=47 // pred_region
          %333 = dma.done %s325, 128
        $region52: #{tpu_custom_call.1} parent=47 // pred_fallthru
          _
        // Predicated region
        $region53: #{tpu_custom_call.1} parent=47 // pred_check
          %p334 = pneg %p69
        $region54: #{tpu_custom_call.1} parent=47 // pred_check_branch
          %336 = sbr.rel (%p334) target = $region56
        $region55: #{tpu_custom_call.1} parent=47 // pred_region
          %338 = dma.done [#allocation7], 4096
        $region56: #{tpu_custom_call.1} parent=47 // pred_fallthru
          _
        %s339 = sand.u32 %s27, 1
        %s340 = scalar_lea.sflag [#allocation4], %s339
        %s341 = sand.u32 %s82, 1
        %s342 = smul.addr %s341, 8
        %s343 = scalar_lea.vmem [#allocation8], %s342
        // Predicated region
        $region57: #{tpu_custom_call.1} parent=47 // pred_check
          %p344 = pneg %p95
        $region58: #{tpu_custom_call.1} parent=47 // pred_check_branch
          %346 = sbr.rel (%p344) target = $region60
        $region59: #{tpu_custom_call.1} parent=47 // pred_region
          %348 = dma.done %s340, 128
        $region60: #{tpu_custom_call.1} parent=47 // pred_fallthru
          _
        // Predicated region
        $region61: #{tpu_custom_call.1} parent=47 // pred_check
          %p349 = pneg %p116
        $region62: #{tpu_custom_call.1} parent=47 // pred_check_branch
          %351 = sbr.rel (%p349) target = $region64
        $region63: #{tpu_custom_call.1} parent=47 // pred_region
          %353 = dma.done [#allocation7], 4096
        $region64: #{tpu_custom_call.1} parent=47 // pred_fallthru
          _
        // Predicated region
        $region65: #{tpu_custom_call.1} parent=47 // pred_check
          %p354 = pneg %p137
        $region66: #{tpu_custom_call.1} parent=47 // pred_check_branch
          %356 = sbr.rel (%p354) target = $region68
        $region67: #{tpu_custom_call.1} parent=47 // pred_region
          %358 = dma.done [#allocation11], 128
        $region68: #{tpu_custom_call.1} parent=47 // pred_fallthru
          _
        // Predicated region
        $region69: #{tpu_custom_call.1} parent=47 // pred_check
          %p359 = pneg %p158
        $region70: #{tpu_custom_call.1} parent=47 // pred_check_branch
          %361 = sbr.rel (%p359) target = $region72
        $region71: #{tpu_custom_call.1} parent=47 // pred_region
          %363 = dma.done [#allocation11], 128
        $region72: #{tpu_custom_call.1} parent=47 // pred_fallthru
          _
        %s364 = sand.u32 %s27, 1
        %s365 = scalar_lea.sflag [#allocation4], %s364
        %s366 = sand.u32 %s35, 1
        %s367 = smul.addr %s366, 8
        %s368 = scalar_lea.vmem [#allocation3], %s367
        %p369 = pneg %p48
        %p370 = pneg %p45
        %p371 = pneg %p69
        %p372 = pneg %p66
        %s373 = sand.u32 %s27, 1
        %s374 = scalar_lea.sflag [#allocation4], %s373
        %s375 = sand.u32 %s82, 1
        %s376 = smul.addr %s375, 8
        %s377 = scalar_lea.vmem [#allocation8], %s376
        %p378 = pneg %p95
        %p379 = pneg %p92
        %p380 = pneg %p116
        %p381 = pneg %p113
        %p382 = pneg %p137
        %p383 = pneg %p134
        %p384 = pneg %p158
        %p385 = pneg %p155
        %p386 = pneg %p179
        %p387 = pneg %p176
        %p388 = pneg %p205
        %p389 = pneg %p202
        %s390 = sand.u32 %s192, 1
        %s391 = scalar_lea.sflag [#allocation5], %s390
        %s392 = sand.u32 %s192, 1
        %s393 = scalar_lea.vmem [#allocation13], %s392
        %v394 = vld [vmem:[%s328] sm:$0xff]
        %v395 = vld [vmem:[#allocation6] sm:$0xff]
        %v396 = vld [vmem:[#allocation6 + $0x8] sm:$0xff]
        %v397 = vld [vmem:[#allocation6 + $0x10] sm:$0xff]
        %v398 = vld [vmem:[#allocation6 + $0x18] sm:$0xff]
        %v399 = vld [vmem:[#allocation6 + $0x20] sm:$0xff]
        %v400 = vld [vmem:[#allocation6 + $0x28] sm:$0xff]
        %v401 = vld [vmem:[#allocation6 + $0x30] sm:$0xff]
        %v402 = vld [vmem:[#allocation6 + $0x38] sm:$0xff]
        %v403 = vld [vmem:[#allocation6 + $0x40] sm:$0xff]
        %v404 = vld [vmem:[#allocation6 + $0x48] sm:$0xff]
        %v405 = vld [vmem:[#allocation6 + $0x50] sm:$0xff]
        %v406 = vld [vmem:[#allocation6 + $0x58] sm:$0xff]
        %v407 = vld [vmem:[#allocation6 + $0x60] sm:$0xff]
        %v408 = vld [vmem:[#allocation6 + $0x68] sm:$0xff]
        %v409 = vld [vmem:[#allocation6 + $0x70] sm:$0xff]
        %v410 = vld [vmem:[#allocation6 + $0x78] sm:$0xff]
        %v411 = vld [vmem:[#allocation6 + $0x80] sm:$0xff]
        %v412 = vld [vmem:[#allocation6 + $0x88] sm:$0xff]
        %v413 = vld [vmem:[#allocation6 + $0x90] sm:$0xff]
        %v414 = vld [vmem:[#allocation6 + $0x98] sm:$0xff]
        %v415 = vld [vmem:[#allocation6 + $0xa0] sm:$0xff]
        %v416 = vld [vmem:[#allocation6 + $0xa8] sm:$0xff]
        %v417 = vld [vmem:[#allocation6 + $0xb0] sm:$0xff]
        %v418 = vld [vmem:[#allocation6 + $0xb8] sm:$0xff]
        %v419 = vld [vmem:[#allocation6 + $0xc0] sm:$0xff]
        %v420 = vld [vmem:[#allocation6 + $0xc8] sm:$0xff]
        %v421 = vld [vmem:[#allocation6 + $0xd0] sm:$0xff]
        %v422 = vld [vmem:[#allocation6 + $0xd8] sm:$0xff]
        %v423 = vld [vmem:[#allocation6 + $0xe0] sm:$0xff]
        %v424 = vld [vmem:[#allocation6 + $0xe8] sm:$0xff]
        %v425 = vld [vmem:[#allocation6 + $0xf0] sm:$0xff]
        %v426 = vld [vmem:[#allocation6 + $0xf8] sm:$0xff]
        %vm427 = vcmask 261120
        %v429 = vsel %vm427, %v394, 0
        %431 = vmatpush.msra.mxu0 0.0
        %432 = vmatpush.msra.mxu0 0.0
        %433 = vmatpush.msra.mxu0 0.0
        %434 = vmatpush.msra.mxu0 0.0
        %435 = vmatpush.msra.mxu0 0.0
        %436 = vmatpush.msra.mxu0 0.0
        %437 = vmatpush.msra.mxu0 0.0
        %438 = vmatpush.msra.mxu0 0.0
        %439 = vmatpush.msra.mxu0 0.0
        %440 = vmatpush.msra.mxu0 0.0
        %441 = vmatpush.msra.mxu0 0.0
        %442 = vmatpush.msra.mxu0 0.0
        %443 = vmatpush.msra.mxu0 %v419
        %444 = vmatpush.msra.mxu0 %v411
        %445 = vmatpush.msra.mxu0 %v403
        %446 = vmatpush.msra.mxu0 %v395
        %447 = vmatmul.f32.gmra.mxu0 %v429
        %v448 = vpop.f32.mrf.mxu0
        %v449 = vadd.f32 0.0, %v448
        %450 = vdwg.mxu0
        %451 = vmatpush.msra.mxu0 0.0
        %452 = vmatpush.msra.mxu0 0.0
        %453 = vmatpush.msra.mxu0 0.0
        %454 = vmatpush.msra.mxu0 0.0
        %455 = vmatpush.msra.mxu0 0.0
        %456 = vmatpush.msra.mxu0 0.0
        %457 = vmatpush.msra.mxu0 0.0
        %458 = vmatpush.msra.mxu0 0.0
        %459 = vmatpush.msra.mxu0 0.0
        %460 = vmatpush.msra.mxu0 0.0
        %461 = vmatpush.msra.mxu0 0.0
        %462 = vmatpush.msra.mxu0 0.0
        %463 = vmatpush.msra.mxu0 %v420
        %464 = vmatpush.msra.mxu0 %v412
        %465 = vmatpush.msra.mxu0 %v404
        %466 = vmatpush.msra.mxu0 %v396
        %467 = vmatmul.f32.gmra.mxu0 %v429
        %v468 = vpop.f32.mrf.mxu0
        %v469 = vadd.f32 0.0, %v468
        %470 = vdwg.mxu0
        %471 = vmatpush.msra.mxu0 0.0
        %472 = vmatpush.msra.mxu0 0.0
        %473 = vmatpush.msra.mxu0 0.0
        %474 = vmatpush.msra.mxu0 0.0
        %475 = vmatpush.msra.mxu0 0.0
        %476 = vmatpush.msra.mxu0 0.0
        %477 = vmatpush.msra.mxu0 0.0
        %478 = vmatpush.msra.mxu0 0.0
        %479 = vmatpush.msra.mxu0 0.0
        %480 = vmatpush.msra.mxu0 0.0
        %481 = vmatpush.msra.mxu0 0.0
        %482 = vmatpush.msra.mxu0 0.0
        %483 = vmatpush.msra.mxu0 %v421
        %484 = vmatpush.msra.mxu0 %v413
        %485 = vmatpush.msra.mxu0 %v405
        %486 = vmatpush.msra.mxu0 %v397
        %487 = vmatmul.f32.gmra.mxu0 %v429
        %v488 = vpop.f32.mrf.mxu0
        %v489 = vadd.f32 0.0, %v488
        %490 = vdwg.mxu0
        %491 = vmatpush.msra.mxu0 0.0
        %492 = vmatpush.msra.mxu0 0.0
        %493 = vmatpush.msra.mxu0 0.0
        %494 = vmatpush.msra.mxu0 0.0
        %495 = vmatpush.msra.mxu0 0.0
        %496 = vmatpush.msra.mxu0 0.0
        %497 = vmatpush.msra.mxu0 0.0
        %498 = vmatpush.msra.mxu0 0.0
        %499 = vmatpush.msra.mxu0 0.0
        %500 = vmatpush.msra.mxu0 0.0
        %501 = vmatpush.msra.mxu0 0.0
        %502 = vmatpush.msra.mxu0 0.0
        %503 = vmatpush.msra.mxu0 %v422
        %504 = vmatpush.msra.mxu0 %v414
        %505 = vmatpush.msra.mxu0 %v406
        %506 = vmatpush.msra.mxu0 %v398
        %507 = vmatmul.f32.gmra.mxu0 %v429
        %v508 = vpop.f32.mrf.mxu0
        %v509 = vadd.f32 0.0, %v508
        %510 = vdwg.mxu0
        %511 = vmatpush.msra.mxu0 0.0
        %512 = vmatpush.msra.mxu0 0.0
        %513 = vmatpush.msra.mxu0 0.0
        %514 = vmatpush.msra.mxu0 0.0
        %515 = vmatpush.msra.mxu0 0.0
        %516 = vmatpush.msra.mxu0 0.0
        %517 = vmatpush.msra.mxu0 0.0
        %518 = vmatpush.msra.mxu0 0.0
        %519 = vmatpush.msra.mxu0 0.0
        %520 = vmatpush.msra.mxu0 0.0
        %521 = vmatpush.msra.mxu0 0.0
        %522 = vmatpush.msra.mxu0 0.0
        %523 = vmatpush.msra.mxu0 %v423
        %524 = vmatpush.msra.mxu0 %v415
        %525 = vmatpush.msra.mxu0 %v407
        %526 = vmatpush.msra.mxu0 %v399
        %527 = vmatmul.f32.gmra.mxu0 %v429
        %v528 = vpop.f32.mrf.mxu0
        %v529 = vadd.f32 0.0, %v528
        %530 = vdwg.mxu0
        %531 = vmatpush.msra.mxu0 0.0
        %532 = vmatpush.msra.mxu0 0.0
        %533 = vmatpush.msra.mxu0 0.0
        %534 = vmatpush.msra.mxu0 0.0
        %535 = vmatpush.msra.mxu0 0.0
        %536 = vmatpush.msra.mxu0 0.0
        %537 = vmatpush.msra.mxu0 0.0
        %538 = vmatpush.msra.mxu0 0.0
        %539 = vmatpush.msra.mxu0 0.0
        %540 = vmatpush.msra.mxu0 0.0
        %541 = vmatpush.msra.mxu0 0.0
        %542 = vmatpush.msra.mxu0 0.0
        %543 = vmatpush.msra.mxu0 %v424
        %544 = vmatpush.msra.mxu0 %v416
        %545 = vmatpush.msra.mxu0 %v408
        %546 = vmatpush.msra.mxu0 %v400
        %547 = vmatmul.f32.gmra.mxu0 %v429
        %v548 = vpop.f32.mrf.mxu0
        %v549 = vadd.f32 0.0, %v548
        %550 = vdwg.mxu0
        %551 = vmatpush.msra.mxu0 0.0
        %552 = vmatpush.msra.mxu0 0.0
        %553 = vmatpush.msra.mxu0 0.0
        %554 = vmatpush.msra.mxu0 0.0
        %555 = vmatpush.msra.mxu0 0.0
        %556 = vmatpush.msra.mxu0 0.0
        %557 = vmatpush.msra.mxu0 0.0
        %558 = vmatpush.msra.mxu0 0.0
        %559 = vmatpush.msra.mxu0 0.0
        %560 = vmatpush.msra.mxu0 0.0
        %561 = vmatpush.msra.mxu0 0.0
        %562 = vmatpush.msra.mxu0 0.0
        %563 = vmatpush.msra.mxu0 %v425
        %564 = vmatpush.msra.mxu0 %v417
        %565 = vmatpush.msra.mxu0 %v409
        %566 = vmatpush.msra.mxu0 %v401
        %567 = vmatmul.f32.gmra.mxu0 %v429
        %v568 = vpop.f32.mrf.mxu0
        %v569 = vadd.f32 0.0, %v568
        %570 = vdwg.mxu0
        %571 = vmatpush.msra.mxu0 0.0
        %572 = vmatpush.msra.mxu0 0.0
        %573 = vmatpush.msra.mxu0 0.0
        %574 = vmatpush.msra.mxu0 0.0
        %575 = vmatpush.msra.mxu0 0.0
        %576 = vmatpush.msra.mxu0 0.0
        %577 = vmatpush.msra.mxu0 0.0
        %578 = vmatpush.msra.mxu0 0.0
        %579 = vmatpush.msra.mxu0 0.0
        %580 = vmatpush.msra.mxu0 0.0
        %581 = vmatpush.msra.mxu0 0.0
        %582 = vmatpush.msra.mxu0 0.0
        %583 = vmatpush.msra.mxu0 %v426
        %584 = vmatpush.msra.mxu0 %v418
        %585 = vmatpush.msra.mxu0 %v410
        %586 = vmatpush.msra.mxu0 %v402
        %587 = vmatmul.f32.gmra.mxu0 %v429
        %v588 = vpop.f32.mrf.mxu0
        %v589 = vadd.f32 0.0, %v588
        %590 = vdwg.mxu0
        %v591 = vld [vmem:[#allocation10] sm:$0xff]
        %v593 = vperm.slane %v591, 0
        %v594 = vperm.slane %v591, 1
        %v595 = vperm.slane %v591, 2
        %v596 = vperm.slane %v591, 3
        %v597 = vperm.slane %v591, 4
        %v598 = vperm.slane %v591, 5
        %v599 = vperm.slane %v591, 6
        %v600 = vperm.slane %v591, 7
        %v609 = vmul.f32 %v449, %v593
        %v610 = vmul.f32 %v469, %v594
        %v611 = vmul.f32 %v489, %v595
        %v612 = vmul.f32 %v509, %v596
        %v613 = vmul.f32 %v529, %v597
        %v614 = vmul.f32 %v549, %v598
        %v615 = vmul.f32 %v569, %v599
        %v616 = vmul.f32 %v589, %v600
        %v617 = vld [vmem:[%s343] sm:$0xff]
        %v618 = vld [vmem:[#allocation9] sm:$0xff]
        %v619 = vld [vmem:[#allocation9 + $0x8] sm:$0xff]
        %v620 = vld [vmem:[#allocation9 + $0x10] sm:$0xff]
        %v621 = vld [vmem:[#allocation9 + $0x18] sm:$0xff]
        %v622 = vld [vmem:[#allocation9 + $0x20] sm:$0xff]
        %v623 = vld [vmem:[#allocation9 + $0x28] sm:$0xff]
        %v624 = vld [vmem:[#allocation9 + $0x30] sm:$0xff]
        %v625 = vld [vmem:[#allocation9 + $0x38] sm:$0xff]
        %v626 = vld [vmem:[#allocation9 + $0x40] sm:$0xff]
        %v627 = vld [vmem:[#allocation9 + $0x48] sm:$0xff]
        %v628 = vld [vmem:[#allocation9 + $0x50] sm:$0xff]
        %v629 = vld [vmem:[#allocation9 + $0x58] sm:$0xff]
        %v630 = vld [vmem:[#allocation9 + $0x60] sm:$0xff]
        %v631 = vld [vmem:[#allocation9 + $0x68] sm:$0xff]
        %v632 = vld [vmem:[#allocation9 + $0x70] sm:$0xff]
        %v633 = vld [vmem:[#allocation9 + $0x78] sm:$0xff]
        %v634 = vld [vmem:[#allocation9 + $0x80] sm:$0xff]
        %v635 = vld [vmem:[#allocation9 + $0x88] sm:$0xff]
        %v636 = vld [vmem:[#allocation9 + $0x90] sm:$0xff]
        %v637 = vld [vmem:[#allocation9 + $0x98] sm:$0xff]
        %v638 = vld [vmem:[#allocation9 + $0xa0] sm:$0xff]
        %v639 = vld [vmem:[#allocation9 + $0xa8] sm:$0xff]
        %v640 = vld [vmem:[#allocation9 + $0xb0] sm:$0xff]
        %v641 = vld [vmem:[#allocation9 + $0xb8] sm:$0xff]
        %v642 = vld [vmem:[#allocation9 + $0xc0] sm:$0xff]
        %v643 = vld [vmem:[#allocation9 + $0xc8] sm:$0xff]
        %v644 = vld [vmem:[#allocation9 + $0xd0] sm:$0xff]
        %v645 = vld [vmem:[#allocation9 + $0xd8] sm:$0xff]
        %v646 = vld [vmem:[#allocation9 + $0xe0] sm:$0xff]
        %v647 = vld [vmem:[#allocation9 + $0xe8] sm:$0xff]
        %v648 = vld [vmem:[#allocation9 + $0xf0] sm:$0xff]
        %v649 = vld [vmem:[#allocation9 + $0xf8] sm:$0xff]
        %v651 = vsel %vm427, %v617, 0
        %653 = vmatpush.msra.mxu0 0.0
        %654 = vmatpush.msra.mxu0 0.0
        %655 = vmatpush.msra.mxu0 0.0
        %656 = vmatpush.msra.mxu0 0.0
        %657 = vmatpush.msra.mxu0 0.0
        %658 = vmatpush.msra.mxu0 0.0
        %659 = vmatpush.msra.mxu0 0.0
        %660 = vmatpush.msra.mxu0 0.0
        %661 = vmatpush.msra.mxu0 0.0
        %662 = vmatpush.msra.mxu0 0.0
        %663 = vmatpush.msra.mxu0 0.0
        %664 = vmatpush.msra.mxu0 0.0
        %665 = vmatpush.msra.mxu0 %v642
        %666 = vmatpush.msra.mxu0 %v634
        %667 = vmatpush.msra.mxu0 %v626
        %668 = vmatpush.msra.mxu0 %v618
        %669 = vmatmul.f32.gmra.mxu0 %v651
        %v670 = vpop.f32.mrf.mxu0
        %v671 = vadd.f32 0.0, %v670
        %672 = vdwg.mxu0
        %673 = vmatpush.msra.mxu0 0.0
        %674 = vmatpush.msra.mxu0 0.0
        %675 = vmatpush.msra.mxu0 0.0
        %676 = vmatpush.msra.mxu0 0.0
        %677 = vmatpush.msra.mxu0 0.0
        %678 = vmatpush.msra.mxu0 0.0
        %679 = vmatpush.msra.mxu0 0.0
        %680 = vmatpush.msra.mxu0 0.0
        %681 = vmatpush.msra.mxu0 0.0
        %682 = vmatpush.msra.mxu0 0.0
        %683 = vmatpush.msra.mxu0 0.0
        %684 = vmatpush.msra.mxu0 0.0
        %685 = vmatpush.msra.mxu0 %v643
        %686 = vmatpush.msra.mxu0 %v635
        %687 = vmatpush.msra.mxu0 %v627
        %688 = vmatpush.msra.mxu0 %v619
        %689 = vmatmul.f32.gmra.mxu0 %v651
        %v690 = vpop.f32.mrf.mxu0
        %v691 = vadd.f32 0.0, %v690
        %692 = vdwg.mxu0
        %693 = vmatpush.msra.mxu0 0.0
        %694 = vmatpush.msra.mxu0 0.0
        %695 = vmatpush.msra.mxu0 0.0
        %696 = vmatpush.msra.mxu0 0.0
        %697 = vmatpush.msra.mxu0 0.0
        %698 = vmatpush.msra.mxu0 0.0
        %699 = vmatpush.msra.mxu0 0.0
        %700 = vmatpush.msra.mxu0 0.0
        %701 = vmatpush.msra.mxu0 0.0
        %702 = vmatpush.msra.mxu0 0.0
        %703 = vmatpush.msra.mxu0 0.0
        %704 = vmatpush.msra.mxu0 0.0
        %705 = vmatpush.msra.mxu0 %v644
        %706 = vmatpush.msra.mxu0 %v636
        %707 = vmatpush.msra.mxu0 %v628
        %708 = vmatpush.msra.mxu0 %v620
        %709 = vmatmul.f32.gmra.mxu0 %v651
        %v710 = vpop.f32.mrf.mxu0
        %v711 = vadd.f32 0.0, %v710
        %712 = vdwg.mxu0
        %713 = vmatpush.msra.mxu0 0.0
        %714 = vmatpush.msra.mxu0 0.0
        %715 = vmatpush.msra.mxu0 0.0
        %716 = vmatpush.msra.mxu0 0.0
        %717 = vmatpush.msra.mxu0 0.0
        %718 = vmatpush.msra.mxu0 0.0
        %719 = vmatpush.msra.mxu0 0.0
        %720 = vmatpush.msra.mxu0 0.0
        %721 = vmatpush.msra.mxu0 0.0
        %722 = vmatpush.msra.mxu0 0.0
        %723 = vmatpush.msra.mxu0 0.0
        %724 = vmatpush.msra.mxu0 0.0
        %725 = vmatpush.msra.mxu0 %v645
        %726 = vmatpush.msra.mxu0 %v637
        %727 = vmatpush.msra.mxu0 %v629
        %728 = vmatpush.msra.mxu0 %v621
        %729 = vmatmul.f32.gmra.mxu0 %v651
        %v730 = vpop.f32.mrf.mxu0
        %v731 = vadd.f32 0.0, %v730
        %732 = vdwg.mxu0
        %733 = vmatpush.msra.mxu0 0.0
        %734 = vmatpush.msra.mxu0 0.0
        %735 = vmatpush.msra.mxu0 0.0
        %736 = vmatpush.msra.mxu0 0.0
        %737 = vmatpush.msra.mxu0 0.0
        %738 = vmatpush.msra.mxu0 0.0
        %739 = vmatpush.msra.mxu0 0.0
        %740 = vmatpush.msra.mxu0 0.0
        %741 = vmatpush.msra.mxu0 0.0
        %742 = vmatpush.msra.mxu0 0.0
        %743 = vmatpush.msra.mxu0 0.0
        %744 = vmatpush.msra.mxu0 0.0
        %745 = vmatpush.msra.mxu0 %v646
        %746 = vmatpush.msra.mxu0 %v638
        %747 = vmatpush.msra.mxu0 %v630
        %748 = vmatpush.msra.mxu0 %v622
        %749 = vmatmul.f32.gmra.mxu0 %v651
        %v750 = vpop.f32.mrf.mxu0
        %v751 = vadd.f32 0.0, %v750
        %752 = vdwg.mxu0
        %753 = vmatpush.msra.mxu0 0.0
        %754 = vmatpush.msra.mxu0 0.0
        %755 = vmatpush.msra.mxu0 0.0
        %756 = vmatpush.msra.mxu0 0.0
        %757 = vmatpush.msra.mxu0 0.0
        %758 = vmatpush.msra.mxu0 0.0
        %759 = vmatpush.msra.mxu0 0.0
        %760 = vmatpush.msra.mxu0 0.0
        %761 = vmatpush.msra.mxu0 0.0
        %762 = vmatpush.msra.mxu0 0.0
        %763 = vmatpush.msra.mxu0 0.0
        %764 = vmatpush.msra.mxu0 0.0
        %765 = vmatpush.msra.mxu0 %v647
        %766 = vmatpush.msra.mxu0 %v639
        %767 = vmatpush.msra.mxu0 %v631
        %768 = vmatpush.msra.mxu0 %v623
        %769 = vmatmul.f32.gmra.mxu0 %v651
        %v770 = vpop.f32.mrf.mxu0
        %v771 = vadd.f32 0.0, %v770
        %772 = vdwg.mxu0
        %773 = vmatpush.msra.mxu0 0.0
        %774 = vmatpush.msra.mxu0 0.0
        %775 = vmatpush.msra.mxu0 0.0
        %776 = vmatpush.msra.mxu0 0.0
        %777 = vmatpush.msra.mxu0 0.0
        %778 = vmatpush.msra.mxu0 0.0
        %779 = vmatpush.msra.mxu0 0.0
        %780 = vmatpush.msra.mxu0 0.0
        %781 = vmatpush.msra.mxu0 0.0
        %782 = vmatpush.msra.mxu0 0.0
        %783 = vmatpush.msra.mxu0 0.0
        %784 = vmatpush.msra.mxu0 0.0
        %785 = vmatpush.msra.mxu0 %v648
        %786 = vmatpush.msra.mxu0 %v640
        %787 = vmatpush.msra.mxu0 %v632
        %788 = vmatpush.msra.mxu0 %v624
        %789 = vmatmul.f32.gmra.mxu0 %v651
        %v790 = vpop.f32.mrf.mxu0
        %v791 = vadd.f32 0.0, %v790
        %792 = vdwg.mxu0
        %793 = vmatpush.msra.mxu0 0.0
        %794 = vmatpush.msra.mxu0 0.0
        %795 = vmatpush.msra.mxu0 0.0
        %796 = vmatpush.msra.mxu0 0.0
        %797 = vmatpush.msra.mxu0 0.0
        %798 = vmatpush.msra.mxu0 0.0
        %799 = vmatpush.msra.mxu0 0.0
        %800 = vmatpush.msra.mxu0 0.0
        %801 = vmatpush.msra.mxu0 0.0
        %802 = vmatpush.msra.mxu0 0.0
        %803 = vmatpush.msra.mxu0 0.0
        %804 = vmatpush.msra.mxu0 0.0
        %805 = vmatpush.msra.mxu0 %v649
        %806 = vmatpush.msra.mxu0 %v641
        %807 = vmatpush.msra.mxu0 %v633
        %808 = vmatpush.msra.mxu0 %v625
        %809 = vmatmul.f32.gmra.mxu0 %v651
        %v810 = vpop.f32.mrf.mxu0
        %v811 = vadd.f32 0.0, %v810
        %812 = vdwg.mxu0
        %v813 = vld [vmem:[#allocation12] sm:$0xff]
        %v815 = vperm.slane %v813, 0
        %v816 = vperm.slane %v813, 1
        %v817 = vperm.slane %v813, 2
        %v818 = vperm.slane %v813, 3
        %v819 = vperm.slane %v813, 4
        %v820 = vperm.slane %v813, 5
        %v821 = vperm.slane %v813, 6
        %v822 = vperm.slane %v813, 7
        %v831 = vmul.f32 %v671, %v815
        %v832 = vmul.f32 %v691, %v816
        %v833 = vmul.f32 %v711, %v817
        %v834 = vmul.f32 %v731, %v818
        %v835 = vmul.f32 %v751, %v819
        %v836 = vmul.f32 %v771, %v820
        %v837 = vmul.f32 %v791, %v821
        %v838 = vmul.f32 %v811, %v822
        %v839 = vadd.f32 %v609, %v831
        %v840 = vadd.f32 %v610, %v832
        %v841 = vadd.f32 %v611, %v833
        %v842 = vadd.f32 %v612, %v834
        %v843 = vadd.f32 %v613, %v835
        %v844 = vadd.f32 %v614, %v836
        %v845 = vadd.f32 %v615, %v837
        %v846 = vadd.f32 %v616, %v838
        %v847 = vadd.f32 %v839, %v840
        %v848 = vadd.f32 %v847, %v841
        %v849 = vadd.f32 %v848, %v842
        %v850 = vadd.f32 %v849, %v843
        %v851 = vadd.f32 %v850, %v844
        %v852 = vadd.f32 %v851, %v845
        %v853 = vadd.f32 %v852, %v846
        %854 = vadd.xlane.f32.xlu0 %v853
        %v855 = vpop.xlane.xlu0 %854
        %s856 = sld [smem:[#allocation2]]
        %v857 = vstv %s856
        %v858 = vadd.f32 %v855, %v857
        %v860 = vlaneseq
        %v861 = vand.u32 %v860, 127
        %v862 = vperm.slane %v858, %v861
        %vm864 = vcmask 57344
        %865 = vst.msk [vmem:[%s393] sm:$0x1] %vm864, %v862
        %s866 = sand.u32 %s192, 1
        %s867 = scalar_lea.sflag [#allocation5], %s866
        %s868 = sand.u32 %s192, 1
        %s869 = scalar_lea.vmem [#allocation13], %s868
        // Predicated region
        $region73: #{tpu_custom_call.1} parent=47 // pred_check
          %p870 = pneg %p202
        $region74: #{tpu_custom_call.1} parent=47 // pred_check_branch
          %872 = sbr.rel (%p870) target = $region76
        $region75: #{tpu_custom_call.1} parent=47 // pred_region
          %874 = vsyncadd %s867, 0
          %s875 = scalar_lea.hbm %s7, %s27
          %s877 = sshll.u32 %s869, 4
          %s878 = int_to_ptr.vmem [resolvable:$true] %s877
          %s879 = sshll.u32 %s875, 4
          %s880 = int_to_ptr.hbm [resolvable:$true] %s879
          %882 = dma.vmem_to_hbm [thread:$0]  %s878, 16, %s880, %s867
        $region76: #{tpu_custom_call.1} parent=47 // pred_fallthru
          _
      $region48: #{tpu_custom_call.1} parent=5 // pred_fallthru
        _
      %p883 = scmp.le.s32.totalorder 2, %s22
      // Predicated region
      $region77: #{tpu_custom_call.1} parent=5 // pred_check
        %p884 = pneg %p883
      $region78: #{tpu_custom_call.1} parent=5 // pred_check_branch
        %886 = sbr.rel (%p884) target = $region80
      $region79: #{tpu_custom_call.1} parent=5 // pred_region
        %s887 = ssub.s32 %s22, 2
        // Predicated region
        $region81: #{tpu_custom_call.1} parent=79 // pred_check
          %p888 = pneg %p208
        $region82: #{tpu_custom_call.1} parent=79 // pred_check_branch
          %890 = sbr.rel (%p888) target = $region84
        $region83: #{tpu_custom_call.1} parent=79 // pred_region
          %s891 = sand.u32 %s193, 1
          %s892 = scalar_lea.sflag [#allocation5], %s891
          %s893 = sand.u32 %s193, 1
          %s894 = scalar_lea.vmem [#allocation13], %s893
          %896 = dma.done %s892, 16
        $region84: #{tpu_custom_call.1} parent=79 // pred_fallthru
          _
      $region80: #{tpu_custom_call.1} parent=5 // pred_fallthru
        _
    $region6: #{tpu_custom_call.1} parent=1 // loop_footer
      %s26 = sadd.s32 1, %s22
    $region7: #{tpu_custom_call.1} parent=1 // loop_footer_branch
      %21 = sbr.rel target = $region3
    $region8: #{tpu_custom_call.1} parent=1 // loop_exit
      _
    %897 = vsyncpa [#allocation4], 1
    %s898 = scalar_lea.sflag [#allocation4], 1
    %899 = vsyncpa %s898, 1
    %900 = vsyncpa [#allocation7], 1
    %901 = vsyncpa [#allocation11], 1
    %902 = vsyncpa [#allocation5], 1
    %s903 = scalar_lea.sflag [#allocation5], 1
    %904 = vsyncpa %s903, 1

// kernel: tpu_custom_call.1
$region0: #{tpu_custom_call.1}
  #allocation0 [shape = 'u32[]', space=smem, size = 0x4, offset = 0x4, fixed_abs, tag = 'smem constant byte address 0x4 - core index']
  #allocation1 [shape = 'u32[72,128]{1,0:T(1,128)}', space=vmem, size = 0x9000, scoped, tag = 'internal scratch']
  #allocation2 [shape = 'f32[1,1]{1,0:T(1,128)S(6)}', space=smem, size = 0x200, scoped, tag = 'scoped memory for tpu_custom_call.1']
  %s0 = inlined_call_operand.hbm [shape: f32[16,32], index: 0, kind: input, shape index: {}]
  %s1 = inlined_call_operand.hbm [shape: f32[32,1024], index: 1, kind: input, shape index: {}]
  %s2 = inlined_call_operand.hbm [shape: f32[16,32], index: 2, kind: input, shape index: {}]
  %s3 = inlined_call_operand.hbm [shape: f32[32,1024], index: 3, kind: input, shape index: {}]
  %s4 = inlined_call_operand.hbm [shape: f32[1,1024], index: 4, kind: input, shape index: {}]
  %s5 = inlined_call_operand.hbm [shape: f32[1,1024], index: 5, kind: input, shape index: {}]
  %s6 = inlined_call_operand.<no memory space> [shape: f32[1,1], index: 6, kind: input, shape index: {}]
  %s7 = inlined_call_operand.hbm [shape: f32[2,1,8], index: 7, kind: output, shape index: {}]
  %s8 = sld [smem:[#allocation0]]
  $region85: #{tpu_custom_call.1} parent=0
    _
  %s10 = ssub.s32 1, %s8
  %s11 = scalar_select 0, %s10, %s8
  %12 = sst [smem:[#allocation2]] %s6
  $region1: #{tpu_custom_call.1} parent=0
    #allocation3 [shape = 'u8[8192]{0}', space=vmem, size = 0x2000, scoped, tag = 'input window, operand 0']
    #allocation4 [shape = 's32[2]{0}', space=sflag, size = 0x8, scoped, tag = 'scoped memory for tpu_custom_call.1']
    #allocation5 [shape = 's32[2]{0}', space=sflag, size = 0x8, scoped, tag = 'scoped memory for tpu_custom_call.1']
    #allocation6 [shape = 'u8[131072]{0}', space=vmem, size = 0x20000, scoped, tag = 'input window, operand 1, single buffered']
    #allocation7 [shape = 's32[1]{0}', space=sflag, size = 0x4, scoped, tag = 'scoped memory for tpu_custom_call.1']
    #allocation8 [shape = 'u8[8192]{0}', space=vmem, size = 0x2000, scoped, tag = 'input window, operand 2']
    #allocation9 [shape = 'u8[131072]{0}', space=vmem, size = 0x20000, scoped, tag = 'input window, operand 3, single buffered']
    #allocation10 [shape = 'u8[4096]{0}', space=vmem, size = 0x1000, scoped, tag = 'input window, operand 4, single buffered']
    #allocation11 [shape = 's32[1]{0}', space=sflag, size = 0x4, scoped, tag = 'scoped memory for tpu_custom_call.1']
    #allocation12 [shape = 'u8[4096]{0}', space=vmem, size = 0x1000, scoped, tag = 'input window, operand 5, single buffered']
    #allocation13 [shape = 'u8[1024]{0}', space=vmem, size = 0x400, scoped, tag = 'output window, operand 0']
    %13 = vsyncpa [#allocation4], 0
    %s14 = scalar_lea.sflag [#allocation4], 1
    %15 = vsyncpa %s14, 0
    %16 = vsyncpa [#allocation7], 0
    %17 = vsyncpa [#allocation11], 0
    %18 = vsyncpa [#allocation5], 0
    %s19 = scalar_lea.sflag [#allocation5], 1
    %20 = vsyncpa %s19, 0
    loop: start=0, step=1, limit=4
    $region2: #{tpu_custom_call.1} parent=1 // loop_pre_header
      _
    $region3: #{tpu_custom_call.1} parent=1 // loop_header
      %s22 = sphi 0, %s26
      %p23 = scmp.ge.s32.totalorder %s22, 4
      %s32 = sphi 0, %s34
      %s35 = sphi 0, %s32
      %s36 = sphi 0, %s35
      %s52 = sphi 0, %s36
      %s56 = sphi 0, %s56
      %s58 = sphi 0, %s56
      %s59 = sphi 0, %s58
      %s73 = sphi 0, %s59
      %s79 = sphi 0, %s81
      %s82 = sphi 0, %s79
      %s83 = sphi 0, %s82
      %s99 = sphi 0, %s83
      %s103 = sphi 0, %s103
      %s105 = sphi 0, %s103
      %s106 = sphi 0, %s105
      %s120 = sphi 0, %s106
      %s124 = sphi 0, %s124
      %s126 = sphi 0, %s124
      %s127 = sphi 0, %s126
      %s141 = sphi 0, %s127
      %s145 = sphi 0, %s145
      %s147 = sphi 0, %s145
      %s148 = sphi 0, %s147
      %s162 = sphi 0, %s148
      %s166 = sphi 0, %s166
      %s168 = sphi 0, %s166
      %s169 = sphi 0, %s168
      %s183 = sphi 0, %s169
      %s189 = sphi 0, %s191
      %s192 = sphi 0, %s189
      %s193 = sphi 0, %s192
      %s209 = sphi 0, %s193
    $region4: #{tpu_custom_call.1} parent=1 // loop_header_branch
      %25 = sbr.rel (%p23) target = $region8
    $region5: #{tpu_custom_call.1} parent=1 // loop_body
      %s27 = ssub.s32 %s22, 1
      %s28 = ssub.s32 %s22, 2
      %s29 = sadd.s32 %s22, 1
      %s30 = ssub.s32 %s22, %s29
      %p31 = scmp.eq.s32.totalorder %s30, 0
      %s33 = sadd.s32 %s32, 1
      %s34 = scalar_select %p31, %s32, %s33
      %p37 = pneg %p31
      %p38 = scmp.eq.s32.totalorder %s22, 1
      %p39 = por %p37, %p38
      %p40 = scmp.ne.s32.totalorder %s32, %s35
      %p41 = scmp.eq.s32.totalorder %s22, 0
      %p42 = por %p40, %p41
      %p43 = scmp.ne.s32.totalorder %s32, %s35
      %p44 = scmp.eq.s32.totalorder %s27, 1
      %p45 = por %p43, %p44
      %p46 = scmp.ne.s32.totalorder %s35, %s36
      %p47 = scmp.eq.s32.totalorder %s27, 0
      %p48 = por %p46, %p47
      %p49 = scmp.ne.s32.totalorder %s35, %s36
      %p50 = scmp.eq.s32.totalorder %s28, 1
      %p51 = por %p49, %p50
      %p53 = scmp.ne.s32.totalorder %s36, %s52
      %p54 = scmp.eq.s32.totalorder %s28, 0
      %p55 = por %p53, %p54
      %s57 = sadd.s32 %s56, 1
      %p60 = scmp.eq.s32.totalorder %s22, 1
      %p61 = scmp.ne.s32.totalorder %s56, %s58
      %p62 = scmp.eq.s32.totalorder %s22, 0
      %p63 = por %p61, %p62
      %p64 = scmp.ne.s32.totalorder %s56, %s58
      %p65 = scmp.eq.s32.totalorder %s27, 1
      %p66 = por %p64, %p65
      %p67 = scmp.ne.s32.totalorder %s58, %s59
      %p68 = scmp.eq.s32.totalorder %s27, 0
      %p69 = por %p67, %p68
      %p70 = scmp.ne.s32.totalorder %s58, %s59
      %p71 = scmp.eq.s32.totalorder %s28, 1
      %p72 = por %p70, %p71
      %p74 = scmp.ne.s32.totalorder %s59, %s73
      %p75 = scmp.eq.s32.totalorder %s28, 0
      %p76 = por %p74, %p75
      %s77 = ssub.s32 %s22, %s29
      %p78 = scmp.eq.s32.totalorder %s77, 0
      %s80 = sadd.s32 %s79, 1
      %s81 = scalar_select %p78, %s79, %s80
      %p84 = pneg %p78
      %p85 = scmp.eq.s32.totalorder %s22, 1
      %p86 = por %p84, %p85
      %p87 = scmp.ne.s32.totalorder %s79, %s82
      %p88 = scmp.eq.s32.totalorder %s22, 0
      %p89 = por %p87, %p88
      %p90 = scmp.ne.s32.totalorder %s79, %s82
      %p91 = scmp.eq.s32.totalorder %s27, 1
      %p92 = por %p90, %p91
      %p93 = scmp.ne.s32.totalorder %s82, %s83
      %p94 = scmp.eq.s32.totalorder %s27, 0
      %p95 = por %p93, %p94
      %p96 = scmp.ne.s32.totalorder %s82, %s83
      %p97 = scmp.eq.s32.totalorder %s28, 1
      %p98 = por %p96, %p97
      %p100 = scmp.ne.s32.totalorder %s83, %s99
      %p101 = scmp.eq.s32.totalorder %s28, 0
      %p102 = por %p100, %p101
      %s104 = sadd.s32 %s103, 1
      %p107 = scmp.eq.s32.totalorder %s22, 1
      %p108 = scmp.ne.s32.totalorder %s103, %s105
      %p109 = scmp.eq.s32.totalorder %s22, 0
      %p110 = por %p108, %p109
      %p111 = scmp.ne.s32.totalorder %s103, %s105
      %p112 = scmp.eq.s32.totalorder %s27, 1
      %p113 = por %p111, %p112
      %p114 = scmp.ne.s32.totalorder %s105, %s106
      %p115 = scmp.eq.s32.totalorder %s27, 0
      %p116 = por %p114, %p115
      %p117 = scmp.ne.s32.totalorder %s105, %s106
      %p118 = scmp.eq.s32.totalorder %s28, 1
      %p119 = por %p117, %p118
      %p121 = scmp.ne.s32.totalorder %s106, %s120
      %p122 = scmp.eq.s32.totalorder %s28, 0
      %p123 = por %p121, %p122
      %s125 = sadd.s32 %s124, 1
      %p128 = scmp.eq.s32.totalorder %s22, 1
      %p129 = scmp.ne.s32.totalorder %s124, %s126
      %p130 = scmp.eq.s32.totalorder %s22, 0
      %p131 = por %p129, %p130
      %p132 = scmp.ne.s32.totalorder %s124, %s126
      %p133 = scmp.eq.s32.totalorder %s27, 1
      %p134 = por %p132, %p133
      %p135 = scmp.ne.s32.totalorder %s126, %s127
      %p136 = scmp.eq.s32.totalorder %s27, 0
      %p137 = por %p135, %p136
      %p138 = scmp.ne.s32.totalorder %s126, %s127
      %p139 = scmp.eq.s32.totalorder %s28, 1
      %p140 = por %p138, %p139
      %p142 = scmp.ne.s32.totalorder %s127, %s141
      %p143 = scmp.eq.s32.totalorder %s28, 0
      %p144 = por %p142, %p143
      %s146 = sadd.s32 %s145, 1
      %p149 = scmp.eq.s32.totalorder %s22, 1
      %p150 = scmp.ne.s32.totalorder %s145, %s147
      %p151 = scmp.eq.s32.totalorder %s22, 0
      %p152 = por %p150, %p151
      %p153 = scmp.ne.s32.totalorder %s145, %s147
      %p154 = scmp.eq.s32.totalorder %s27, 1
      %p155 = por %p153, %p154
      %p156 = scmp.ne.s32.totalorder %s147, %s148
      %p157 = scmp.eq.s32.totalorder %s27, 0
      %p158 = por %p156, %p157
      %p159 = scmp.ne.s32.totalorder %s147, %s148
      %p160 = scmp.eq.s32.totalorder %s28, 1
      %p161 = por %p159, %p160
      %p163 = scmp.ne.s32.totalorder %s148, %s162
      %p164 = scmp.eq.s32.totalorder %s28, 0
      %p165 = por %p163, %p164
      %s167 = sadd.s32 %s166, 1
      %p170 = scmp.eq.s32.totalorder %s22, 1
      %p171 = scmp.ne.s32.totalorder %s166, %s168
      %p172 = scmp.eq.s32.totalorder %s22, 0
      %p173 = por %p171, %p172
      %p174 = scmp.ne.s32.totalorder %s166, %s168
      %p175 = scmp.eq.s32.totalorder %s27, 1
      %p176 = por %p174, %p175
      %p177 = scmp.ne.s32.totalorder %s168, %s169
      %p178 = scmp.eq.s32.totalorder %s27, 0
      %p179 = por %p177, %p178
      %p180 = scmp.ne.s32.totalorder %s168, %s169
      %p181 = scmp.eq.s32.totalorder %s28, 1
      %p182 = por %p180, %p181
      %p184 = scmp.ne.s32.totalorder %s169, %s183
      %p185 = scmp.eq.s32.totalorder %s28, 0
      %p186 = por %p184, %p185
      %s187 = ssub.s32 %s22, %s29
      %p188 = scmp.eq.s32.totalorder %s187, 0
      %s190 = sadd.s32 %s189, 1
      %s191 = scalar_select %p188, %s189, %s190
      %p194 = pneg %p188
      %p195 = scmp.eq.s32.totalorder %s22, 1
      %p196 = por %p194, %p195
      %p197 = scmp.ne.s32.totalorder %s189, %s192
      %p198 = scmp.eq.s32.totalorder %s22, 0
      %p199 = por %p197, %p198
      %p200 = scmp.ne.s32.totalorder %s189, %s192
      %p201 = scmp.eq.s32.totalorder %s27, 1
      %p202 = por %p200, %p201
      %p203 = scmp.ne.s32.totalorder %s192, %s193
      %p204 = scmp.eq.s32.totalorder %s27, 0
      %p205 = por %p203, %p204
      %p206 = scmp.ne.s32.totalorder %s192, %s193
      %p207 = scmp.eq.s32.totalorder %s28, 1
      %p208 = por %p206, %p207
      %p210 = scmp.ne.s32.totalorder %s193, %s209
      %p211 = scmp.eq.s32.totalorder %s28, 0
      %p212 = por %p210, %p211
      %p213 = scmp.le.s32.totalorder 1, %s22
      %p214 = scmp.lt.s32.totalorder %s22, 3
      %p215 = pnand %p213, %p214
      %p216 = pneg %p215
      // Predicated region
      $region9: #{tpu_custom_call.1} parent=5 // pred_check
        _
      $region10: #{tpu_custom_call.1} parent=5 // pred_check_branch
        %218 = sbr.rel (%p215) target = $region12
      $region11: #{tpu_custom_call.1} parent=5 // pred_region
        %s219 = ssub.s32 %s22, 1
        // Predicated region
        $region13: #{tpu_custom_call.1} parent=11 // pred_check
          %p220 = pneg %p69
        $region14: #{tpu_custom_call.1} parent=11 // pred_check_branch
          %222 = sbr.rel (%p220) target = $region16
        $region15: #{tpu_custom_call.1} parent=11 // pred_region
          %224 = vsyncadd [#allocation7], 0
          %s225 = sshll.u32 %s1, 4
          %s226 = int_to_ptr.hbm [resolvable:$true] %s225
          %s227 = sshll.u32 [#allocation6], 4
          %s228 = int_to_ptr.vmem [resolvable:$true] %s227
          %233 = dma.hbm_to_vmem [thread:$0]  %s226, 4096, %s228, [#allocation7], 1024, 1024, 64
        $region16: #{tpu_custom_call.1} parent=11 // pred_fallthru
          _
        // Predicated region
        $region17: #{tpu_custom_call.1} parent=11 // pred_check
          %p234 = pneg %p116
        $region18: #{tpu_custom_call.1} parent=11 // pred_check_branch
          %236 = sbr.rel (%p234) target = $region20
        $region19: #{tpu_custom_call.1} parent=11 // pred_region
          %238 = vsyncadd [#allocation7], 0
          %s239 = sshll.u32 %s3, 4
          %s240 = int_to_ptr.hbm [resolvable:$true] %s239
          %s241 = sshll.u32 [#allocation9], 4
          %s242 = int_to_ptr.vmem [resolvable:$true] %s241
          %247 = dma.hbm_to_vmem [thread:$0]  %s240, 4096, %s242, [#allocation7], 1024, 1024, 64
        $region20: #{tpu_custom_call.1} parent=11 // pred_fallthru
          _
        // Predicated region
        $region21: #{tpu_custom_call.1} parent=11 // pred_check
          %p248 = pneg %p137
        $region22: #{tpu_custom_call.1} parent=11 // pred_check_branch
          %250 = sbr.rel (%p248) target = $region24
        $region23: #{tpu_custom_call.1} parent=11 // pred_region
          %252 = vsyncadd [#allocation11], 0
          %s254 = sshll.u32 %s4, 4
          %s255 = int_to_ptr.hbm [resolvable:$true] %s254
          %s256 = sshll.u32 [#allocation10], 4
          %s257 = int_to_ptr.vmem [resolvable:$true] %s256
          %259 = dma.hbm_to_vmem [thread:$0]  %s255, 128, %s257, [#allocation11]
        $region24: #{tpu_custom_call.1} parent=11 // pred_fallthru
          _
        // Predicated region
        $region25: #{tpu_custom_call.1} parent=11 // pred_check
          %p260 = pneg %p158
        $region26: #{tpu_custom_call.1} parent=11 // pred_check_branch
          %262 = sbr.rel (%p260) target = $region28
        $region27: #{tpu_custom_call.1} parent=11 // pred_region
          %264 = vsyncadd [#allocation11], 0
          %s266 = sshll.u32 %s5, 4
          %s267 = int_to_ptr.hbm [resolvable:$true] %s266
          %s268 = sshll.u32 [#allocation12], 4
          %s269 = int_to_ptr.vmem [resolvable:$true] %s268
          %271 = dma.hbm_to_vmem [thread:$0]  %s267, 128, %s269, [#allocation11]
        $region28: #{tpu_custom_call.1} parent=11 // pred_fallthru
          _
        // Predicated region
        $region29: #{tpu_custom_call.1} parent=11 // pred_check
          %p272 = pneg %p179
        $region30: #{tpu_custom_call.1} parent=11 // pred_check_branch
          %274 = sbr.rel (%p272) target = $region32
        $region31: #{tpu_custom_call.1} parent=11 // pred_region
          _
        $region32: #{tpu_custom_call.1} parent=11 // pred_fallthru
          _
      $region12: #{tpu_custom_call.1} parent=5 // pred_fallthru
        _
      %p275 = scmp.lt.s32.totalorder %s22, 2
      // Predicated region
      $region33: #{tpu_custom_call.1} parent=5 // pred_check
        %p276 = pneg %p275
      $region34: #{tpu_custom_call.1} parent=5 // pred_check_branch
        %278 = sbr.rel (%p276) target = $region36
      $region35: #{tpu_custom_call.1} parent=5 // pred_region
        // Predicated region
        $region37: #{tpu_custom_call.1} parent=35 // pred_check
          %p279 = pneg %p42
        $region38: #{tpu_custom_call.1} parent=35 // pred_check_branch
          %281 = sbr.rel (%p279) target = $region40
        $region39: #{tpu_custom_call.1} parent=35 // pred_region
          %s282 = sand.u32 %s22, 1
          %s283 = scalar_lea.sflag [#allocation4], %s282
          %s284 = sand.u32 %s32, 1
          %s285 = smul.addr %s284, 8
          %s286 = scalar_lea.vmem [#allocation3], %s285
          %288 = vsyncadd %s283, 0
          %s289 = smul.addr %s22, 8
          %s290 = scalar_lea.hbm %s0, %s289
          %s292 = sshll.u32 %s290, 4
          %s293 = int_to_ptr.hbm [resolvable:$true] %s292
          %s294 = sshll.u32 %s286, 4
          %s295 = int_to_ptr.vmem [resolvable:$true] %s294
          %297 = dma.hbm_to_vmem [thread:$0]  %s293, 128, %s295, %s283
        $region40: #{tpu_custom_call.1} parent=35 // pred_fallthru
          _
        // Predicated region
        $region41: #{tpu_custom_call.1} parent=35 // pred_check
          %p298 = pneg %p89
        $region42: #{tpu_custom_call.1} parent=35 // pred_check_branch
          %300 = sbr.rel (%p298) target = $region44
        $region43: #{tpu_custom_call.1} parent=35 // pred_region
          %s301 = sand.u32 %s22, 1
          %s302 = scalar_lea.sflag [#allocation4], %s301
          %s303 = sand.u32 %s79, 1
          %s304 = smul.addr %s303, 8
          %s305 = scalar_lea.vmem [#allocation8], %s304
          %307 = vsyncadd %s302, 0
          %s308 = smul.addr %s22, 8
          %s309 = scalar_lea.hbm %s2, %s308
          %s311 = sshll.u32 %s309, 4
          %s312 = int_to_ptr.hbm [resolvable:$true] %s311
          %s313 = sshll.u32 %s305, 4
          %s314 = int_to_ptr.vmem [resolvable:$true] %s313
          %316 = dma.hbm_to_vmem [thread:$0]  %s312, 128, %s314, %s302
        $region44: #{tpu_custom_call.1} parent=35 // pred_fallthru
          _
      $region36: #{tpu_custom_call.1} parent=5 // pred_fallthru
        _
      %p317 = scmp.le.s32.totalorder 1, %s22
      %p318 = scmp.lt.s32.totalorder %s22, 3
      %p319 = pnand %p317, %p318
      %p320 = pneg %p319
      // Predicated region
      $region45: #{tpu_custom_call.1} parent=5 // pred_check
        _
      $region46: #{tpu_custom_call.1} parent=5 // pred_check_branch
        %322 = sbr.rel (%p319) target = $region48
      $region47: #{tpu_custom_call.1} parent=5 // pred_region
        %s323 = ssub.s32 %s22, 1
        %s324 = sand.u32 %s27, 1
        %s325 = scalar_lea.sflag [#allocation4], %s324
        %s326 = sand.u32 %s35, 1
        %s327 = smul.addr %s326, 8
        %s328 = scalar_lea.vmem [#allocation3], %s327
        // Predicated region
        $region49: #{tpu_custom_call.1} parent=47 // pred_check
          %p329 = pneg %p48
        $region50: #{tpu_custom_call.1} parent=47 // pred_check_branch
          %331 = sbr.rel (%p329) target = $region52
        $region51: #{tpu_custom_call.1} parent=47 // pred_region
          %333 = dma.done %s325, 128
        $region52: #{tpu_custom_call.1} parent=47 // pred_fallthru
          _
        // Predicated region
        $region53: #{tpu_custom_call.1} parent=47 // pred_check
          %p334 = pneg %p69
        $region54: #{tpu_custom_call.1} parent=47 // pred_check_branch
          %336 = sbr.rel (%p334) target = $region56
        $region55: #{tpu_custom_call.1} parent=47 // pred_region
          %338 = dma.done [#allocation7], 4096
        $region56: #{tpu_custom_call.1} parent=47 // pred_fallthru
          _
        %s339 = sand.u32 %s27, 1
        %s340 = scalar_lea.sflag [#allocation4], %s339
        %s341 = sand.u32 %s82, 1
        %s342 = smul.addr %s341, 8
        %s343 = scalar_lea.vmem [#allocation8], %s342
        // Predicated region
        $region57: #{tpu_custom_call.1} parent=47 // pred_check
          %p344 = pneg %p95
        $region58: #{tpu_custom_call.1} parent=47 // pred_check_branch
          %346 = sbr.rel (%p344) target = $region60
        $region59: #{tpu_custom_call.1} parent=47 // pred_region
          %348 = dma.done %s340, 128
        $region60: #{tpu_custom_call.1} parent=47 // pred_fallthru
          _
        // Predicated region
        $region61: #{tpu_custom_call.1} parent=47 // pred_check
          %p349 = pneg %p116
        $region62: #{tpu_custom_call.1} parent=47 // pred_check_branch
          %351 = sbr.rel (%p349) target = $region64
        $region63: #{tpu_custom_call.1} parent=47 // pred_region
          %353 = dma.done [#allocation7], 4096
        $region64: #{tpu_custom_call.1} parent=47 // pred_fallthru
          _
        // Predicated region
        $region65: #{tpu_custom_call.1} parent=47 // pred_check
          %p354 = pneg %p137
        $region66: #{tpu_custom_call.1} parent=47 // pred_check_branch
          %356 = sbr.rel (%p354) target = $region68
        $region67: #{tpu_custom_call.1} parent=47 // pred_region
          %358 = dma.done [#allocation11], 128
        $region68: #{tpu_custom_call.1} parent=47 // pred_fallthru
          _
        // Predicated region
        $region69: #{tpu_custom_call.1} parent=47 // pred_check
          %p359 = pneg %p158
        $region70: #{tpu_custom_call.1} parent=47 // pred_check_branch
          %361 = sbr.rel (%p359) target = $region72
        $region71: #{tpu_custom_call.1} parent=47 // pred_region
          %363 = dma.done [#allocation11], 128
        $region72: #{tpu_custom_call.1} parent=47 // pred_fallthru
          _
        %s364 = sand.u32 %s27, 1
        %s365 = scalar_lea.sflag [#allocation4], %s364
        %s366 = sand.u32 %s35, 1
        %s367 = smul.addr %s366, 8
        %s368 = scalar_lea.vmem [#allocation3], %s367
        %p369 = pneg %p48
        %p370 = pneg %p45
        %p371 = pneg %p69
        %p372 = pneg %p66
        %s373 = sand.u32 %s27, 1
        %s374 = scalar_lea.sflag [#allocation4], %s373
        %s375 = sand.u32 %s82, 1
        %s376 = smul.addr %s375, 8
        %s377 = scalar_lea.vmem [#allocation8], %s376
        %p378 = pneg %p95
        %p379 = pneg %p92
        %p380 = pneg %p116
        %p381 = pneg %p113
        %p382 = pneg %p137
        %p383 = pneg %p134
        %p384 = pneg %p158
        %p385 = pneg %p155
        %p386 = pneg %p179
        %p387 = pneg %p176
        %p388 = pneg %p205
        %p389 = pneg %p202
        %s390 = sand.u32 %s192, 1
        %s391 = scalar_lea.sflag [#allocation5], %s390
        %s392 = sand.u32 %s192, 1
        %s393 = scalar_lea.vmem [#allocation13], %s392
        %v394 = vld [vmem:[%s328] sm:$0xff]
        %v395 = vld [vmem:[#allocation6] sm:$0xff]
        %v396 = vld [vmem:[#allocation6 + $0x8] sm:$0xff]
        %v397 = vld [vmem:[#allocation6 + $0x10] sm:$0xff]
        %v398 = vld [vmem:[#allocation6 + $0x18] sm:$0xff]
        %v399 = vld [vmem:[#allocation6 + $0x20] sm:$0xff]
        %v400 = vld [vmem:[#allocation6 + $0x28] sm:$0xff]
        %v401 = vld [vmem:[#allocation6 + $0x30] sm:$0xff]
        %v402 = vld [vmem:[#allocation6 + $0x38] sm:$0xff]
        %v403 = vld [vmem:[#allocation6 + $0x40] sm:$0xff]
        %v404 = vld [vmem:[#allocation6 + $0x48] sm:$0xff]
        %v405 = vld [vmem:[#allocation6 + $0x50] sm:$0xff]
        %v406 = vld [vmem:[#allocation6 + $0x58] sm:$0xff]
        %v407 = vld [vmem:[#allocation6 + $0x60] sm:$0xff]
        %v408 = vld [vmem:[#allocation6 + $0x68] sm:$0xff]
        %v409 = vld [vmem:[#allocation6 + $0x70] sm:$0xff]
        %v410 = vld [vmem:[#allocation6 + $0x78] sm:$0xff]
        %v411 = vld [vmem:[#allocation6 + $0x80] sm:$0xff]
        %v412 = vld [vmem:[#allocation6 + $0x88] sm:$0xff]
        %v413 = vld [vmem:[#allocation6 + $0x90] sm:$0xff]
        %v414 = vld [vmem:[#allocation6 + $0x98] sm:$0xff]
        %v415 = vld [vmem:[#allocation6 + $0xa0] sm:$0xff]
        %v416 = vld [vmem:[#allocation6 + $0xa8] sm:$0xff]
        %v417 = vld [vmem:[#allocation6 + $0xb0] sm:$0xff]
        %v418 = vld [vmem:[#allocation6 + $0xb8] sm:$0xff]
        %v419 = vld [vmem:[#allocation6 + $0xc0] sm:$0xff]
        %v420 = vld [vmem:[#allocation6 + $0xc8] sm:$0xff]
        %v421 = vld [vmem:[#allocation6 + $0xd0] sm:$0xff]
        %v422 = vld [vmem:[#allocation6 + $0xd8] sm:$0xff]
        %v423 = vld [vmem:[#allocation6 + $0xe0] sm:$0xff]
        %v424 = vld [vmem:[#allocation6 + $0xe8] sm:$0xff]
        %v425 = vld [vmem:[#allocation6 + $0xf0] sm:$0xff]
        %v426 = vld [vmem:[#allocation6 + $0xf8] sm:$0xff]
        %vm427 = vcmask 261120
        %v429 = vsel %vm427, %v394, 0
        %431 = vmatpush.msra.mxu0 0.0
        %432 = vmatpush.msra.mxu0 0.0
        %433 = vmatpush.msra.mxu0 0.0
        %434 = vmatpush.msra.mxu0 0.0
        %435 = vmatpush.msra.mxu0 0.0
        %436 = vmatpush.msra.mxu0 0.0
        %437 = vmatpush.msra.mxu0 0.0
        %438 = vmatpush.msra.mxu0 0.0
        %439 = vmatpush.msra.mxu0 0.0
        %440 = vmatpush.msra.mxu0 0.0
        %441 = vmatpush.msra.mxu0 0.0
        %442 = vmatpush.msra.mxu0 0.0
        %443 = vmatpush.msra.mxu0 %v419
        %444 = vmatpush.msra.mxu0 %v411
        %445 = vmatpush.msra.mxu0 %v403
        %446 = vmatpush.msra.mxu0 %v395
        %447 = vmatmul.f32.gmra.mxu0 %v429
        %v448 = vpop.f32.mrf.mxu0
        %v449 = vadd.f32 0.0, %v448
        %450 = vdwg.mxu0
        %451 = vmatpush.msra.mxu0 0.0
        %452 = vmatpush.msra.mxu0 0.0
        %453 = vmatpush.msra.mxu0 0.0
        %454 = vmatpush.msra.mxu0 0.0
        %455 = vmatpush.msra.mxu0 0.0
        %456 = vmatpush.msra.mxu0 0.0
        %457 = vmatpush.msra.mxu0 0.0
        %458 = vmatpush.msra.mxu0 0.0
        %459 = vmatpush.msra.mxu0 0.0
        %460 = vmatpush.msra.mxu0 0.0
        %461 = vmatpush.msra.mxu0 0.0
        %462 = vmatpush.msra.mxu0 0.0
        %463 = vmatpush.msra.mxu0 %v420
        %464 = vmatpush.msra.mxu0 %v412
        %465 = vmatpush.msra.mxu0 %v404
        %466 = vmatpush.msra.mxu0 %v396
        %467 = vmatmul.f32.gmra.mxu0 %v429
        %v468 = vpop.f32.mrf.mxu0
        %v469 = vadd.f32 0.0, %v468
        %470 = vdwg.mxu0
        %471 = vmatpush.msra.mxu0 0.0
        %472 = vmatpush.msra.mxu0 0.0
        %473 = vmatpush.msra.mxu0 0.0
        %474 = vmatpush.msra.mxu0 0.0
        %475 = vmatpush.msra.mxu0 0.0
        %476 = vmatpush.msra.mxu0 0.0
        %477 = vmatpush.msra.mxu0 0.0
        %478 = vmatpush.msra.mxu0 0.0
        %479 = vmatpush.msra.mxu0 0.0
        %480 = vmatpush.msra.mxu0 0.0
        %481 = vmatpush.msra.mxu0 0.0
        %482 = vmatpush.msra.mxu0 0.0
        %483 = vmatpush.msra.mxu0 %v421
        %484 = vmatpush.msra.mxu0 %v413
        %485 = vmatpush.msra.mxu0 %v405
        %486 = vmatpush.msra.mxu0 %v397
        %487 = vmatmul.f32.gmra.mxu0 %v429
        %v488 = vpop.f32.mrf.mxu0
        %v489 = vadd.f32 0.0, %v488
        %490 = vdwg.mxu0
        %491 = vmatpush.msra.mxu0 0.0
        %492 = vmatpush.msra.mxu0 0.0
        %493 = vmatpush.msra.mxu0 0.0
        %494 = vmatpush.msra.mxu0 0.0
        %495 = vmatpush.msra.mxu0 0.0
        %496 = vmatpush.msra.mxu0 0.0
        %497 = vmatpush.msra.mxu0 0.0
        %498 = vmatpush.msra.mxu0 0.0
        %499 = vmatpush.msra.mxu0 0.0
        %500 = vmatpush.msra.mxu0 0.0
        %501 = vmatpush.msra.mxu0 0.0
        %502 = vmatpush.msra.mxu0 0.0
        %503 = vmatpush.msra.mxu0 %v422
        %504 = vmatpush.msra.mxu0 %v414
        %505 = vmatpush.msra.mxu0 %v406
        %506 = vmatpush.msra.mxu0 %v398
        %507 = vmatmul.f32.gmra.mxu0 %v429
        %v508 = vpop.f32.mrf.mxu0
        %v509 = vadd.f32 0.0, %v508
        %510 = vdwg.mxu0
        %511 = vmatpush.msra.mxu0 0.0
        %512 = vmatpush.msra.mxu0 0.0
        %513 = vmatpush.msra.mxu0 0.0
        %514 = vmatpush.msra.mxu0 0.0
        %515 = vmatpush.msra.mxu0 0.0
        %516 = vmatpush.msra.mxu0 0.0
        %517 = vmatpush.msra.mxu0 0.0
        %518 = vmatpush.msra.mxu0 0.0
        %519 = vmatpush.msra.mxu0 0.0
        %520 = vmatpush.msra.mxu0 0.0
        %521 = vmatpush.msra.mxu0 0.0
        %522 = vmatpush.msra.mxu0 0.0
        %523 = vmatpush.msra.mxu0 %v423
        %524 = vmatpush.msra.mxu0 %v415
        %525 = vmatpush.msra.mxu0 %v407
        %526 = vmatpush.msra.mxu0 %v399
        %527 = vmatmul.f32.gmra.mxu0 %v429
        %v528 = vpop.f32.mrf.mxu0
        %v529 = vadd.f32 0.0, %v528
        %530 = vdwg.mxu0
        %531 = vmatpush.msra.mxu0 0.0
        %532 = vmatpush.msra.mxu0 0.0
        %533 = vmatpush.msra.mxu0 0.0
        %534 = vmatpush.msra.mxu0 0.0
        %535 = vmatpush.msra.mxu0 0.0
        %536 = vmatpush.msra.mxu0 0.0
        %537 = vmatpush.msra.mxu0 0.0
        %538 = vmatpush.msra.mxu0 0.0
        %539 = vmatpush.msra.mxu0 0.0
        %540 = vmatpush.msra.mxu0 0.0
        %541 = vmatpush.msra.mxu0 0.0
        %542 = vmatpush.msra.mxu0 0.0
        %543 = vmatpush.msra.mxu0 %v424
        %544 = vmatpush.msra.mxu0 %v416
        %545 = vmatpush.msra.mxu0 %v408
        %546 = vmatpush.msra.mxu0 %v400
        %547 = vmatmul.f32.gmra.mxu0 %v429
        %v548 = vpop.f32.mrf.mxu0
        %v549 = vadd.f32 0.0, %v548
        %550 = vdwg.mxu0
        %551 = vmatpush.msra.mxu0 0.0
        %552 = vmatpush.msra.mxu0 0.0
        %553 = vmatpush.msra.mxu0 0.0
        %554 = vmatpush.msra.mxu0 0.0
        %555 = vmatpush.msra.mxu0 0.0
        %556 = vmatpush.msra.mxu0 0.0
        %557 = vmatpush.msra.mxu0 0.0
        %558 = vmatpush.msra.mxu0 0.0
        %559 = vmatpush.msra.mxu0 0.0
        %560 = vmatpush.msra.mxu0 0.0
        %561 = vmatpush.msra.mxu0 0.0
        %562 = vmatpush.msra.mxu0 0.0
        %563 = vmatpush.msra.mxu0 %v425
        %564 = vmatpush.msra.mxu0 %v417
        %565 = vmatpush.msra.mxu0 %v409
        %566 = vmatpush.msra.mxu0 %v401
        %567 = vmatmul.f32.gmra.mxu0 %v429
        %v568 = vpop.f32.mrf.mxu0
        %v569 = vadd.f32 0.0, %v568
        %570 = vdwg.mxu0
        %571 = vmatpush.msra.mxu0 0.0
        %572 = vmatpush.msra.mxu0 0.0
        %573 = vmatpush.msra.mxu0 0.0
        %574 = vmatpush.msra.mxu0 0.0
        %575 = vmatpush.msra.mxu0 0.0
        %576 = vmatpush.msra.mxu0 0.0
        %577 = vmatpush.msra.mxu0 0.0
        %578 = vmatpush.msra.mxu0 0.0
        %579 = vmatpush.msra.mxu0 0.0
        %580 = vmatpush.msra.mxu0 0.0
        %581 = vmatpush.msra.mxu0 0.0
        %582 = vmatpush.msra.mxu0 0.0
        %583 = vmatpush.msra.mxu0 %v426
        %584 = vmatpush.msra.mxu0 %v418
        %585 = vmatpush.msra.mxu0 %v410
        %586 = vmatpush.msra.mxu0 %v402
        %587 = vmatmul.f32.gmra.mxu0 %v429
        %v588 = vpop.f32.mrf.mxu0
        %v589 = vadd.f32 0.0, %v588
        %590 = vdwg.mxu0
        %v591 = vld [vmem:[#allocation10] sm:$0xff]
        %v593 = vperm.slane %v591, 0
        %v594 = vperm.slane %v591, 1
        %v595 = vperm.slane %v591, 2
        %v596 = vperm.slane %v591, 3
        %v597 = vperm.slane %v591, 4
        %v598 = vperm.slane %v591, 5
        %v599 = vperm.slane %v591, 6
        %v600 = vperm.slane %v591, 7
        %v609 = vmul.f32 %v449, %v593
        %v610 = vmul.f32 %v469, %v594
        %v611 = vmul.f32 %v489, %v595
        %v612 = vmul.f32 %v509, %v596
        %v613 = vmul.f32 %v529, %v597
        %v614 = vmul.f32 %v549, %v598
        %v615 = vmul.f32 %v569, %v599
        %v616 = vmul.f32 %v589, %v600
        %v617 = vld [vmem:[%s343] sm:$0xff]
        %v618 = vld [vmem:[#allocation9] sm:$0xff]
        %v619 = vld [vmem:[#allocation9 + $0x8] sm:$0xff]
        %v620 = vld [vmem:[#allocation9 + $0x10] sm:$0xff]
        %v621 = vld [vmem:[#allocation9 + $0x18] sm:$0xff]
        %v622 = vld [vmem:[#allocation9 + $0x20] sm:$0xff]
        %v623 = vld [vmem:[#allocation9 + $0x28] sm:$0xff]
        %v624 = vld [vmem:[#allocation9 + $0x30] sm:$0xff]
        %v625 = vld [vmem:[#allocation9 + $0x38] sm:$0xff]
        %v626 = vld [vmem:[#allocation9 + $0x40] sm:$0xff]
        %v627 = vld [vmem:[#allocation9 + $0x48] sm:$0xff]
        %v628 = vld [vmem:[#allocation9 + $0x50] sm:$0xff]
        %v629 = vld [vmem:[#allocation9 + $0x58] sm:$0xff]
        %v630 = vld [vmem:[#allocation9 + $0x60] sm:$0xff]
        %v631 = vld [vmem:[#allocation9 + $0x68] sm:$0xff]
        %v632 = vld [vmem:[#allocation9 + $0x70] sm:$0xff]
        %v633 = vld [vmem:[#allocation9 + $0x78] sm:$0xff]
        %v634 = vld [vmem:[#allocation9 + $0x80] sm:$0xff]
        %v635 = vld [vmem:[#allocation9 + $0x88] sm:$0xff]
        %v636 = vld [vmem:[#allocation9 + $0x90] sm:$0xff]
        %v637 = vld [vmem:[#allocation9 + $0x98] sm:$0xff]
        %v638 = vld [vmem:[#allocation9 + $0xa0] sm:$0xff]
        %v639 = vld [vmem:[#allocation9 + $0xa8] sm:$0xff]
        %v640 = vld [vmem:[#allocation9 + $0xb0] sm:$0xff]
        %v641 = vld [vmem:[#allocation9 + $0xb8] sm:$0xff]
        %v642 = vld [vmem:[#allocation9 + $0xc0] sm:$0xff]
        %v643 = vld [vmem:[#allocation9 + $0xc8] sm:$0xff]
        %v644 = vld [vmem:[#allocation9 + $0xd0] sm:$0xff]
        %v645 = vld [vmem:[#allocation9 + $0xd8] sm:$0xff]
        %v646 = vld [vmem:[#allocation9 + $0xe0] sm:$0xff]
        %v647 = vld [vmem:[#allocation9 + $0xe8] sm:$0xff]
        %v648 = vld [vmem:[#allocation9 + $0xf0] sm:$0xff]
        %v649 = vld [vmem:[#allocation9 + $0xf8] sm:$0xff]
        %v651 = vsel %vm427, %v617, 0
        %653 = vmatpush.msra.mxu0 0.0
        %654 = vmatpush.msra.mxu0 0.0
        %655 = vmatpush.msra.mxu0 0.0
        %656 = vmatpush.msra.mxu0 0.0
        %657 = vmatpush.msra.mxu0 0.0
        %658 = vmatpush.msra.mxu0 0.0
        %659 = vmatpush.msra.mxu0 0.0
        %660 = vmatpush.msra.mxu0 0.0
        %661 = vmatpush.msra.mxu0 0.0
        %662 = vmatpush.msra.mxu0 0.0
        %663 = vmatpush.msra.mxu0 0.0
        %664 = vmatpush.msra.mxu0 0.0
        %665 = vmatpush.msra.mxu0 %v642
        %666 = vmatpush.msra.mxu0 %v634
        %667 = vmatpush.msra.mxu0 %v626
        %668 = vmatpush.msra.mxu0 %v618
        %669 = vmatmul.f32.gmra.mxu0 %v651
        %v670 = vpop.f32.mrf.mxu0
        %v671 = vadd.f32 0.0, %v670
        %672 = vdwg.mxu0
        %673 = vmatpush.msra.mxu0 0.0
        %674 = vmatpush.msra.mxu0 0.0
        %675 = vmatpush.msra.mxu0 0.0
        %676 = vmatpush.msra.mxu0 0.0
        %677 = vmatpush.msra.mxu0 0.0
        %678 = vmatpush.msra.mxu0 0.0
        %679 = vmatpush.msra.mxu0 0.0
        %680 = vmatpush.msra.mxu0 0.0
        %681 = vmatpush.msra.mxu0 0.0
        %682 = vmatpush.msra.mxu0 0.0
        %683 = vmatpush.msra.mxu0 0.0
        %684 = vmatpush.msra.mxu0 0.0
        %685 = vmatpush.msra.mxu0 %v643
        %686 = vmatpush.msra.mxu0 %v635
        %687 = vmatpush.msra.mxu0 %v627
        %688 = vmatpush.msra.mxu0 %v619
        %689 = vmatmul.f32.gmra.mxu0 %v651
        %v690 = vpop.f32.mrf.mxu0
        %v691 = vadd.f32 0.0, %v690
        %692 = vdwg.mxu0
        %693 = vmatpush.msra.mxu0 0.0
        %694 = vmatpush.msra.mxu0 0.0
        %695 = vmatpush.msra.mxu0 0.0
        %696 = vmatpush.msra.mxu0 0.0
        %697 = vmatpush.msra.mxu0 0.0
        %698 = vmatpush.msra.mxu0 0.0
        %699 = vmatpush.msra.mxu0 0.0
        %700 = vmatpush.msra.mxu0 0.0
        %701 = vmatpush.msra.mxu0 0.0
        %702 = vmatpush.msra.mxu0 0.0
        %703 = vmatpush.msra.mxu0 0.0
        %704 = vmatpush.msra.mxu0 0.0
        %705 = vmatpush.msra.mxu0 %v644
        %706 = vmatpush.msra.mxu0 %v636
        %707 = vmatpush.msra.mxu0 %v628
        %708 = vmatpush.msra.mxu0 %v620
        %709 = vmatmul.f32.gmra.mxu0 %v651
        %v710 = vpop.f32.mrf.mxu0
        %v711 = vadd.f32 0.0, %v710
        %712 = vdwg.mxu0
        %713 = vmatpush.msra.mxu0 0.0
        %714 = vmatpush.msra.mxu0 0.0
        %715 = vmatpush.msra.mxu0 0.0
        %716 = vmatpush.msra.mxu0 0.0
        %717 = vmatpush.msra.mxu0 0.0
        %718 = vmatpush.msra.mxu0 0.0
        %719 = vmatpush.msra.mxu0 0.0
        %720 = vmatpush.msra.mxu0 0.0
        %721 = vmatpush.msra.mxu0 0.0
        %722 = vmatpush.msra.mxu0 0.0
        %723 = vmatpush.msra.mxu0 0.0
        %724 = vmatpush.msra.mxu0 0.0
        %725 = vmatpush.msra.mxu0 %v645
        %726 = vmatpush.msra.mxu0 %v637
        %727 = vmatpush.msra.mxu0 %v629
        %728 = vmatpush.msra.mxu0 %v621
        %729 = vmatmul.f32.gmra.mxu0 %v651
        %v730 = vpop.f32.mrf.mxu0
        %v731 = vadd.f32 0.0, %v730
        %732 = vdwg.mxu0
        %733 = vmatpush.msra.mxu0 0.0
        %734 = vmatpush.msra.mxu0 0.0
        %735 = vmatpush.msra.mxu0 0.0
        %736 = vmatpush.msra.mxu0 0.0
        %737 = vmatpush.msra.mxu0 0.0
        %738 = vmatpush.msra.mxu0 0.0
        %739 = vmatpush.msra.mxu0 0.0
        %740 = vmatpush.msra.mxu0 0.0
        %741 = vmatpush.msra.mxu0 0.0
        %742 = vmatpush.msra.mxu0 0.0
        %743 = vmatpush.msra.mxu0 0.0
        %744 = vmatpush.msra.mxu0 0.0
        %745 = vmatpush.msra.mxu0 %v646
        %746 = vmatpush.msra.mxu0 %v638
        %747 = vmatpush.msra.mxu0 %v630
        %748 = vmatpush.msra.mxu0 %v622
        %749 = vmatmul.f32.gmra.mxu0 %v651
        %v750 = vpop.f32.mrf.mxu0
        %v751 = vadd.f32 0.0, %v750
        %752 = vdwg.mxu0
        %753 = vmatpush.msra.mxu0 0.0
        %754 = vmatpush.msra.mxu0 0.0
        %755 = vmatpush.msra.mxu0 0.0
        %756 = vmatpush.msra.mxu0 0.0
        %757 = vmatpush.msra.mxu0 0.0
        %758 = vmatpush.msra.mxu0 0.0
        %759 = vmatpush.msra.mxu0 0.0
        %760 = vmatpush.msra.mxu0 0.0
        %761 = vmatpush.msra.mxu0 0.0
        %762 = vmatpush.msra.mxu0 0.0
        %763 = vmatpush.msra.mxu0 0.0
        %764 = vmatpush.msra.mxu0 0.0
        %765 = vmatpush.msra.mxu0 %v647
        %766 = vmatpush.msra.mxu0 %v639
        %767 = vmatpush.msra.mxu0 %v631
        %768 = vmatpush.msra.mxu0 %v623
        %769 = vmatmul.f32.gmra.mxu0 %v651
        %v770 = vpop.f32.mrf.mxu0
        %v771 = vadd.f32 0.0, %v770
        %772 = vdwg.mxu0
        %773 = vmatpush.msra.mxu0 0.0
        %774 = vmatpush.msra.mxu0 0.0
        %775 = vmatpush.msra.mxu0 0.0
        %776 = vmatpush.msra.mxu0 0.0
        %777 = vmatpush.msra.mxu0 0.0
        %778 = vmatpush.msra.mxu0 0.0
        %779 = vmatpush.msra.mxu0 0.0
        %780 = vmatpush.msra.mxu0 0.0
        %781 = vmatpush.msra.mxu0 0.0
        %782 = vmatpush.msra.mxu0 0.0
        %783 = vmatpush.msra.mxu0 0.0
        %784 = vmatpush.msra.mxu0 0.0
        %785 = vmatpush.msra.mxu0 %v648
        %786 = vmatpush.msra.mxu0 %v640
        %787 = vmatpush.msra.mxu0 %v632
        %788 = vmatpush.msra.mxu0 %v624
        %789 = vmatmul.f32.gmra.mxu0 %v651
        %v790 = vpop.f32.mrf.mxu0
        %v791 = vadd.f32 0.0, %v790
        %792 = vdwg.mxu0
        %793 = vmatpush.msra.mxu0 0.0
        %794 = vmatpush.msra.mxu0 0.0
        %795 = vmatpush.msra.mxu0 0.0
        %796 = vmatpush.msra.mxu0 0.0
        %797 = vmatpush.msra.mxu0 0.0
        %798 = vmatpush.msra.mxu0 0.0
        %799 = vmatpush.msra.mxu0 0.0
        %800 = vmatpush.msra.mxu0 0.0
        %801 = vmatpush.msra.mxu0 0.0
        %802 = vmatpush.msra.mxu0 0.0
        %803 = vmatpush.msra.mxu0 0.0
        %804 = vmatpush.msra.mxu0 0.0
        %805 = vmatpush.msra.mxu0 %v649
        %806 = vmatpush.msra.mxu0 %v641
        %807 = vmatpush.msra.mxu0 %v633
        %808 = vmatpush.msra.mxu0 %v625
        %809 = vmatmul.f32.gmra.mxu0 %v651
        %v810 = vpop.f32.mrf.mxu0
        %v811 = vadd.f32 0.0, %v810
        %812 = vdwg.mxu0
        %v813 = vld [vmem:[#allocation12] sm:$0xff]
        %v815 = vperm.slane %v813, 0
        %v816 = vperm.slane %v813, 1
        %v817 = vperm.slane %v813, 2
        %v818 = vperm.slane %v813, 3
        %v819 = vperm.slane %v813, 4
        %v820 = vperm.slane %v813, 5
        %v821 = vperm.slane %v813, 6
        %v822 = vperm.slane %v813, 7
        %v831 = vmul.f32 %v671, %v815
        %v832 = vmul.f32 %v691, %v816
        %v833 = vmul.f32 %v711, %v817
        %v834 = vmul.f32 %v731, %v818
        %v835 = vmul.f32 %v751, %v819
        %v836 = vmul.f32 %v771, %v820
        %v837 = vmul.f32 %v791, %v821
        %v838 = vmul.f32 %v811, %v822
        %v839 = vadd.f32 %v609, %v831
        %v840 = vadd.f32 %v610, %v832
        %v841 = vadd.f32 %v611, %v833
        %v842 = vadd.f32 %v612, %v834
        %v843 = vadd.f32 %v613, %v835
        %v844 = vadd.f32 %v614, %v836
        %v845 = vadd.f32 %v615, %v837
        %v846 = vadd.f32 %v616, %v838
        %v847 = vadd.f32 %v839, %v840
        %v848 = vadd.f32 %v847, %v841
        %v849 = vadd.f32 %v848, %v842
        %v850 = vadd.f32 %v849, %v843
        %v851 = vadd.f32 %v850, %v844
        %v852 = vadd.f32 %v851, %v845
        %v853 = vadd.f32 %v852, %v846
        %854 = vadd.xlane.f32.xlu0 %v853
        %v855 = vpop.xlane.xlu0 %854
        %s856 = sld [smem:[#allocation2]]
        %v857 = vstv %s856
        %v858 = vadd.f32 %v855, %v857
        %v860 = vlaneseq
        %v861 = vand.u32 %v860, 127
        %v862 = vperm.slane %v858, %v861
        %vm864 = vcmask 57344
        %865 = vst.msk [vmem:[%s393] sm:$0x1] %vm864, %v862
        %s866 = sand.u32 %s192, 1
        %s867 = scalar_lea.sflag [#allocation5], %s866
        %s868 = sand.u32 %s192, 1
        %s869 = scalar_lea.vmem [#allocation13], %s868
        // Predicated region
        $region73: #{tpu_custom_call.1} parent=47 // pred_check
          %p870 = pneg %p202
        $region74: #{tpu_custom_call.1} parent=47 // pred_check_branch
          %872 = sbr.rel (%p870) target = $region76
        $region75: #{tpu_custom_call.1} parent=47 // pred_region
          %874 = vsyncadd %s867, 0
          %s875 = scalar_lea.hbm %s7, %s27
          %s877 = sshll.u32 %s869, 4
          %s878 = int_to_ptr.vmem [resolvable:$true] %s877
          %s879 = sshll.u32 %s875, 4
          %s880 = int_to_ptr.hbm [resolvable:$true] %s879
          %882 = dma.vmem_to_hbm [thread:$0]  %s878, 16, %s880, %s867
        $region76: #{tpu_custom_call.1} parent=47 // pred_fallthru
          _
      $region48: #{tpu_custom_call.1} parent=5 // pred_fallthru
        _
      %p883 = scmp.le.s32.totalorder 2, %s22
      // Predicated region
      $region77: #{tpu_custom_call.1} parent=5 // pred_check
        %p884 = pneg %p883
      $region78: #{tpu_custom_call.1} parent=5 // pred_check_branch
        %886 = sbr.rel (%p884) target = $region80
      $region79: #{tpu_custom_call.1} parent=5 // pred_region
        %s887 = ssub.s32 %s22, 2
        // Predicated region
        $region81: #{tpu_custom_call.1} parent=79 // pred_check
          %p888 = pneg %p208
        $region82: #{tpu_custom_call.1} parent=79 // pred_check_branch
          %890 = sbr.rel (%p888) target = $region84
        $region83: #{tpu_custom_call.1} parent=79 // pred_region
          %s891 = sand.u32 %s193, 1
          %s892 = scalar_lea.sflag [#allocation5], %s891
          %s893 = sand.u32 %s193, 1
          %s894 = scalar_lea.vmem [#allocation13], %s893
          %896 = dma.done %s892, 16
        $region84: #{tpu_custom_call.1} parent=79 // pred_fallthru
          _
      $region80: #{tpu_custom_call.1} parent=5 // pred_fallthru
        _
    $region6: #{tpu_custom_call.1} parent=1 // loop_footer
      %s26 = sadd.s32 1, %s22
    $region7: #{tpu_custom_call.1} parent=1 // loop_footer_branch
      %21 = sbr.rel target = $region3
    $region8: #{tpu_custom_call.1} parent=1 // loop_exit
      _
    %897 = vsyncpa [#allocation4], 1
    %s898 = scalar_lea.sflag [#allocation4], 1
    %899 = vsyncpa %s898, 1
    %900 = vsyncpa [#allocation7], 1
    %901 = vsyncpa [#allocation11], 1
    %902 = vsyncpa [#allocation5], 1
    %s903 = scalar_lea.sflag [#allocation5], 1
    %904 = vsyncpa %s903, 1

</llo_original>
